<compile_context>
chip_gen: v7x
topology: tpu7x:2x2x1
jax: 0.10.0
libtpu: 0.0.40
codegen_flags: <defaults>
</compile_context>

<pallas_src>
import functools

import jax
import jax.numpy as jnp
from jax.experimental import pallas as pl
from jax.experimental.pallas import tpu as pltpu

# Layer widths: input -> 288 -> 192 -> 144 -> 96 -> 64 -> 32 -> 16 -> 8 -> output
HIDDEN_SIZES = [288, 192, 144, 96, 64, 32, 16, 8]
LANE = 128       # every feature dim padded to a multiple of this
BLOCK_B = 128    # batch tile (multiple of 8; fills MXU rows on v5e)


def _round_up(n, m):
    return ((n + m - 1) // m) * m


def _layout(input_size, output_size):
    """Static packing layout: padded per-layer dims and slab offsets."""
    dims = [input_size] + HIDDEN_SIZES + [output_size]
    in_pads = [_round_up(d, LANE) for d in dims[:-1]]
    out_pads = [_round_up(d, LANE) for d in dims[1:]]
    row_offs, r = [], 0
    for p in in_pads:
        row_offs.append(r)
        r += p
    col_offs, c = [], 0
    for p in out_pads:
        col_offs.append(c)
        c += p
    return dims, in_pads, out_pads, row_offs, col_offs


def mlp_kernel(x_ref, w_ref, b_ref, o_ref, *, layer_meta):
    """All 9 linear layers + ReLUs fused; params read from two packed slabs.

    layer_meta[i] = (row_off, in_pad, col_off, out_pad). Offsets are static and
    128-aligned, so each slice is a tile-aligned view of the VMEM-resident slab.
    """
    n_layers = len(layer_meta)
    h = x_ref[...].astype(jnp.float32)                    # (BLOCK_B, in_pad0)
    for i, (r0, in_p, c0, out_p) in enumerate(layer_meta):
        w = w_ref[r0:r0 + in_p, 0:out_p]                  # bf16 (in_p, out_p)
        b = b_ref[0:1, c0:c0 + out_p]                     # f32  (1, out_p)
        h = jnp.dot(h.astype(jnp.bfloat16), w,
                    preferred_element_type=jnp.float32) + b
        if i < n_layers - 1:                              # final fc has no ReLU
            h = jnp.maximum(h, 0.0)
    o_ref[...] = h.astype(o_ref.dtype)                    # lane-dense full store


def init_params(key, input_size, output_size):
    """PyTorch-style init: U(-1/sqrt(fan_in), 1/sqrt(fan_in)); W stored (in, out)."""
    dims = [input_size] + HIDDEN_SIZES + [output_size]
    params = []
    for i in range(len(dims) - 1):
        fan_in, fan_out = dims[i], dims[i + 1]
        key, kw, kb = jax.random.split(key, 3)
        bound = 1.0 / jnp.sqrt(float(fan_in))
        w = jax.random.uniform(kw, (fan_in, fan_out), jnp.float32, -bound, bound)
        b = jax.random.uniform(kb, (1, fan_out), jnp.float32, -bound, bound)
        params.append((w, b))
    return params


def pack_params(params, input_size, output_size):
    """Pack all weights into one zero-padded bf16 slab and biases into one f32 slab."""
    _, in_pads, out_pads, row_offs, col_offs = _layout(input_size, output_size)
    total_in, total_out, max_out = sum(in_pads), sum(out_pads), max(out_pads)
    w_slab = jnp.zeros((total_in, max_out), jnp.bfloat16)
    b_slab = jnp.zeros((1, total_out), jnp.float32)
    for (w, b), r0, c0 in zip(params, row_offs, col_offs):
        w_slab = w_slab.at[r0:r0 + w.shape[0], 0:w.shape[1]].set(
            w.astype(jnp.bfloat16))
        b_slab = b_slab.at[0, c0:c0 + b.shape[1]].set(b[0].astype(jnp.float32))
    return w_slab, b_slab


@functools.partial(jax.jit, static_argnames=("input_size", "output_size", "block_b"))
def classifier_net_forward(x, w_slab, b_slab, *, input_size, output_size,
                           block_b=BLOCK_B):
    _, in_pads, out_pads, row_offs, col_offs = _layout(input_size, output_size)
    layer_meta = tuple(zip(row_offs, in_pads, col_offs, out_pads))
    in_pad0, out_pad_last = in_pads[0], out_pads[-1]

    batch = x.shape[0]
    b_pad = _round_up(max(batch, 1), block_b)
    # Zero-pad batch (sublane) and feature (lane) dims; padded weights are zero
    # so padded lanes stay inert through every layer.
    x_p = jnp.zeros((b_pad, in_pad0), jnp.float32).at[:batch, :input_size].set(
        x.astype(jnp.float32))

    flops = 2 * b_pad * sum(ip * op for ip, op in zip(in_pads, out_pads))
    bytes_accessed = (w_slab.size * w_slab.dtype.itemsize
                      + b_slab.size * b_slab.dtype.itemsize
                      + x_p.size * 4 + b_pad * out_pad_last * 4)

    out_pad = pl.pallas_call(
        functools.partial(mlp_kernel, layer_meta=layer_meta),
        out_shape=jax.ShapeDtypeStruct((b_pad, out_pad_last), jnp.float32),
        grid=(b_pad // block_b,),
        in_specs=[
            pl.BlockSpec((block_b, in_pad0), lambda i: (i, 0)),   # batch-tiled x
            pl.BlockSpec(w_slab.shape, lambda i: (0, 0)),         # resident weights
            pl.BlockSpec(b_slab.shape, lambda i: (0, 0)),         # resident biases
        ],
        out_specs=pl.BlockSpec((block_b, out_pad_last), lambda i: (i, 0)),
        compiler_params=pltpu.CompilerParams(
            dimension_semantics=("parallel",)),
        cost_estimate=pl.CostEstimate(flops=flops, transcendentals=0,
                                      bytes_accessed=bytes_accessed),
    )(x_p, w_slab, b_slab)

    return out_pad[:batch, :output_size]


def reference_forward(x, params):
    """Pure-JAX reference with the same bf16-input / f32-accumulate math."""
    h = x.astype(jnp.float32)
    for i, (w, b) in enumerate(params):
        h = jnp.dot(h.astype(jnp.bfloat16), w.astype(jnp.bfloat16),
                    preferred_element_type=jnp.float32) + b
        if i < len(params) - 1:
            h = jnp.maximum(h, 0.0)
    return h


if __name__ == "__main__":
    key = jax.random.PRNGKey(0)
    input_size = 32
    output_size = 10
    batch = 4

    key, kx = jax.random.split(key)
    x = jax.random.normal(kx, (batch, input_size), jnp.float32)
    params = init_params(key, input_size, output_size)
    w_slab, b_slab = pack_params(params, input_size, output_size)

    out = classifier_net_forward(x, w_slab, b_slab,
                                 input_size=input_size, output_size=output_size)
    out = jax.block_until_ready(out)

    ref = reference_forward(x, params)
    assert out.shape == (batch, output_size)
    assert jnp.allclose(out, ref, atol=1e-3, rtol=1e-3), "mismatch vs reference"

    print("KERNEL_OK")
</pallas_src>

<mosaic_0001>
module attributes {stable_mosaic.version = 11 : i64} {
  func.func @mlp_kernel(%arg0: i32, %arg1: memref<128x128xf32, #tpu.memory_space<vmem>>, %arg2: memref<1664x384xbf16, #tpu.memory_space<vmem>>, %arg3: memref<1x1664xf32, #tpu.memory_space<vmem>>, %arg4: memref<128x128xf32, #tpu.memory_space<vmem>>) attributes {dimension_semantics = [#tpu.dimension_semantics<parallel>], iteration_bounds = array<i64: 1>, scalar_prefetch = 0 : i64, scratch_operands = 0 : i64, tpu.core_type = #tpu.core_type<tc>, window_params = [{transform_indices = @transform_0, window_bounds = array<i64: 128, 128>}, {pipeline_mode = #tpu.pipeline_mode<synchronous>, transform_indices = @transform_1, window_bounds = array<i64: 1664, 384>}, {pipeline_mode = #tpu.pipeline_mode<synchronous>, transform_indices = @transform_2, window_bounds = array<i64: 1, 1664>}, {transform_indices = @transform_3, window_bounds = array<i64: 128, 128>}]} {
    %c0 = arith.constant 0 : index
    %c0_0 = arith.constant 0 : index
    %0 = vector.load %arg1[%c0, %c0_0] : memref<128x128xf32, #tpu.memory_space<vmem>>, vector<128x128xf32>
    %c0_1 = arith.constant 0 : index
    %c0_2 = arith.constant 0 : index
    %1 = vector.load %arg2[%c0_1, %c0_2] : memref<1664x384xbf16, #tpu.memory_space<vmem>>, vector<128x384xbf16>
    %c0_3 = arith.constant 0 : index
    %c0_4 = arith.constant 0 : index
    %2 = vector.load %arg3[%c0_3, %c0_4] : memref<1x1664xf32, #tpu.memory_space<vmem>>, vector<1x384xf32>
    %3 = arith.truncf %0 : vector<128x128xf32> to vector<128x128xbf16>
    %cst = arith.constant dense<0.000000e+00> : vector<128x384xf32>
    %4 = tpu.matmul %3, %1, %cst {dimension_numbers = #tpu.dot_dimension_numbers<[1], [0], [0], [1], [0, 0, 1, 1], [], []>} : vector<128x128xbf16>, vector<128x384xbf16>, vector<128x384xf32> -> vector<128x384xf32>
    %5 = vector.broadcast %2 : vector<1x384xf32> to vector<128x384xf32>
    %6 = arith.addf %4, %5 : vector<128x384xf32>
    %cst_5 = arith.constant 0.000000e+00 : f32
    %7 = vector.broadcast %cst_5 : f32 to vector<128x384xf32>
    %8 = arith.maximumf %6, %7 : vector<128x384xf32>
    %c128 = arith.constant 128 : index
    %c0_6 = arith.constant 0 : index
    %9 = vector.load %arg2[%c128, %c0_6] : memref<1664x384xbf16, #tpu.memory_space<vmem>>, vector<384x256xbf16>
    %c0_7 = arith.constant 0 : index
    %c384 = arith.constant 384 : index
    %10 = vector.load %arg3[%c0_7, %c384] : memref<1x1664xf32, #tpu.memory_space<vmem>>, vector<1x256xf32>
    %11 = arith.truncf %8 : vector<128x384xf32> to vector<128x384xbf16>
    %cst_8 = arith.constant dense<0.000000e+00> : vector<128x256xf32>
    %12 = tpu.matmul %11, %9, %cst_8 {dimension_numbers = #tpu.dot_dimension_numbers<[1], [0], [0], [1], [0, 0, 1, 1], [], []>} : vector<128x384xbf16>, vector<384x256xbf16>, vector<128x256xf32> -> vector<128x256xf32>
    %13 = vector.broadcast %10 : vector<1x256xf32> to vector<128x256xf32>
    %14 = arith.addf %12, %13 : vector<128x256xf32>
    %cst_9 = arith.constant 0.000000e+00 : f32
    %15 = vector.broadcast %cst_9 : f32 to vector<128x256xf32>
    %16 = arith.maximumf %14, %15 : vector<128x256xf32>
    %c512 = arith.constant 512 : index
    %c0_10 = arith.constant 0 : index
    %17 = vector.load %arg2[%c512, %c0_10] : memref<1664x384xbf16, #tpu.memory_space<vmem>>, vector<256x256xbf16>
    %c0_11 = arith.constant 0 : index
    %c640 = arith.constant 640 : index
    %18 = vector.load %arg3[%c0_11, %c640] : memref<1x1664xf32, #tpu.memory_space<vmem>>, vector<1x256xf32>
    %19 = arith.truncf %16 : vector<128x256xf32> to vector<128x256xbf16>
    %cst_12 = arith.constant dense<0.000000e+00> : vector<128x256xf32>
    %20 = tpu.matmul %19, %17, %cst_12 {dimension_numbers = #tpu.dot_dimension_numbers<[1], [0], [0], [1], [0, 0, 1, 1], [], []>} : vector<128x256xbf16>, vector<256x256xbf16>, vector<128x256xf32> -> vector<128x256xf32>
    %21 = vector.broadcast %18 : vector<1x256xf32> to vector<128x256xf32>
    %22 = arith.addf %20, %21 : vector<128x256xf32>
    %cst_13 = arith.constant 0.000000e+00 : f32
    %23 = vector.broadcast %cst_13 : f32 to vector<128x256xf32>
    %24 = arith.maximumf %22, %23 : vector<128x256xf32>
    %c768 = arith.constant 768 : index
    %c0_14 = arith.constant 0 : index
    %25 = vector.load %arg2[%c768, %c0_14] : memref<1664x384xbf16, #tpu.memory_space<vmem>>, vector<256x128xbf16>
    %c0_15 = arith.constant 0 : index
    %c896 = arith.constant 896 : index
    %26 = vector.load %arg3[%c0_15, %c896] : memref<1x1664xf32, #tpu.memory_space<vmem>>, vector<1x128xf32>
    %27 = arith.truncf %24 : vector<128x256xf32> to vector<128x256xbf16>
    %cst_16 = arith.constant dense<0.000000e+00> : vector<128x128xf32>
    %28 = tpu.matmul %27, %25, %cst_16 {dimension_numbers = #tpu.dot_dimension_numbers<[1], [0], [0], [1], [0, 0, 1, 1], [], []>} : vector<128x256xbf16>, vector<256x128xbf16>, vector<128x128xf32> -> vector<128x128xf32>
    %29 = vector.broadcast %26 : vector<1x128xf32> to vector<128x128xf32>
    %30 = arith.addf %28, %29 : vector<128x128xf32>
    %cst_17 = arith.constant 0.000000e+00 : f32
    %31 = vector.broadcast %cst_17 : f32 to vector<128x128xf32>
    %32 = arith.maximumf %30, %31 : vector<128x128xf32>
    %c1024 = arith.constant 1024 : index
    %c0_18 = arith.constant 0 : index
    %33 = vector.load %arg2[%c1024, %c0_18] : memref<1664x384xbf16, #tpu.memory_space<vmem>>, vector<128x128xbf16>
    %c0_19 = arith.constant 0 : index
    %c1024_20 = arith.constant 1024 : index
    %34 = vector.load %arg3[%c0_19, %c1024_20] : memref<1x1664xf32, #tpu.memory_space<vmem>>, vector<1x128xf32>
    %35 = arith.truncf %32 : vector<128x128xf32> to vector<128x128xbf16>
    %cst_21 = arith.constant dense<0.000000e+00> : vector<128x128xf32>
    %36 = tpu.matmul %35, %33, %cst_21 {dimension_numbers = #tpu.dot_dimension_numbers<[1], [0], [0], [1], [0, 0, 1, 1], [], []>} : vector<128x128xbf16>, vector<128x128xbf16>, vector<128x128xf32> -> vector<128x128xf32>
    %37 = vector.broadcast %34 : vector<1x128xf32> to vector<128x128xf32>
    %38 = arith.addf %36, %37 : vector<128x128xf32>
    %cst_22 = arith.constant 0.000000e+00 : f32
    %39 = vector.broadcast %cst_22 : f32 to vector<128x128xf32>
    %40 = arith.maximumf %38, %39 : vector<128x128xf32>
    %c1152 = arith.constant 1152 : index
    %c0_23 = arith.constant 0 : index
    %41 = vector.load %arg2[%c1152, %c0_23] : memref<1664x384xbf16, #tpu.memory_space<vmem>>, vector<128x128xbf16>
    %c0_24 = arith.constant 0 : index
    %c1152_25 = arith.constant 1152 : index
    %42 = vector.load %arg3[%c0_24, %c1152_25] : memref<1x1664xf32, #tpu.memory_space<vmem>>, vector<1x128xf32>
    %43 = arith.truncf %40 : vector<128x128xf32> to vector<128x128xbf16>
    %cst_26 = arith.constant dense<0.000000e+00> : vector<128x128xf32>
    %44 = tpu.matmul %43, %41, %cst_26 {dimension_numbers = #tpu.dot_dimension_numbers<[1], [0], [0], [1], [0, 0, 1, 1], [], []>} : vector<128x128xbf16>, vector<128x128xbf16>, vector<128x128xf32> -> vector<128x128xf32>
    %45 = vector.broadcast %42 : vector<1x128xf32> to vector<128x128xf32>
    %46 = arith.addf %44, %45 : vector<128x128xf32>
    %cst_27 = arith.constant 0.000000e+00 : f32
    %47 = vector.broadcast %cst_27 : f32 to vector<128x128xf32>
    %48 = arith.maximumf %46, %47 : vector<128x128xf32>
    %c1280 = arith.constant 1280 : index
    %c0_28 = arith.constant 0 : index
    %49 = vector.load %arg2[%c1280, %c0_28] : memref<1664x384xbf16, #tpu.memory_space<vmem>>, vector<128x128xbf16>
    %c0_29 = arith.constant 0 : index
    %c1280_30 = arith.constant 1280 : index
    %50 = vector.load %arg3[%c0_29, %c1280_30] : memref<1x1664xf32, #tpu.memory_space<vmem>>, vector<1x128xf32>
    %51 = arith.truncf %48 : vector<128x128xf32> to vector<128x128xbf16>
    %cst_31 = arith.constant dense<0.000000e+00> : vector<128x128xf32>
    %52 = tpu.matmul %51, %49, %cst_31 {dimension_numbers = #tpu.dot_dimension_numbers<[1], [0], [0], [1], [0, 0, 1, 1], [], []>} : vector<128x128xbf16>, vector<128x128xbf16>, vector<128x128xf32> -> vector<128x128xf32>
    %53 = vector.broadcast %50 : vector<1x128xf32> to vector<128x128xf32>
    %54 = arith.addf %52, %53 : vector<128x128xf32>
    %cst_32 = arith.constant 0.000000e+00 : f32
    %55 = vector.broadcast %cst_32 : f32 to vector<128x128xf32>
    %56 = arith.maximumf %54, %55 : vector<128x128xf32>
    %c1408 = arith.constant 1408 : index
    %c0_33 = arith.constant 0 : index
    %57 = vector.load %arg2[%c1408, %c0_33] : memref<1664x384xbf16, #tpu.memory_space<vmem>>, vector<128x128xbf16>
    %c0_34 = arith.constant 0 : index
    %c1408_35 = arith.constant 1408 : index
    %58 = vector.load %arg3[%c0_34, %c1408_35] : memref<1x1664xf32, #tpu.memory_space<vmem>>, vector<1x128xf32>
    %59 = arith.truncf %56 : vector<128x128xf32> to vector<128x128xbf16>
    %cst_36 = arith.constant dense<0.000000e+00> : vector<128x128xf32>
    %60 = tpu.matmul %59, %57, %cst_36 {dimension_numbers = #tpu.dot_dimension_numbers<[1], [0], [0], [1], [0, 0, 1, 1], [], []>} : vector<128x128xbf16>, vector<128x128xbf16>, vector<128x128xf32> -> vector<128x128xf32>
    %61 = vector.broadcast %58 : vector<1x128xf32> to vector<128x128xf32>
    %62 = arith.addf %60, %61 : vector<128x128xf32>
    %cst_37 = arith.constant 0.000000e+00 : f32
    %63 = vector.broadcast %cst_37 : f32 to vector<128x128xf32>
    %64 = arith.maximumf %62, %63 : vector<128x128xf32>
    %c1536 = arith.constant 1536 : index
    %c0_38 = arith.constant 0 : index
    %65 = vector.load %arg2[%c1536, %c0_38] : memref<1664x384xbf16, #tpu.memory_space<vmem>>, vector<128x128xbf16>
    %c0_39 = arith.constant 0 : index
    %c1536_40 = arith.constant 1536 : index
    %66 = vector.load %arg3[%c0_39, %c1536_40] : memref<1x1664xf32, #tpu.memory_space<vmem>>, vector<1x128xf32>
    %67 = arith.truncf %64 : vector<128x128xf32> to vector<128x128xbf16>
    %cst_41 = arith.constant dense<0.000000e+00> : vector<128x128xf32>
    %68 = tpu.matmul %67, %65, %cst_41 {dimension_numbers = #tpu.dot_dimension_numbers<[1], [0], [0], [1], [0, 0, 1, 1], [], []>} : vector<128x128xbf16>, vector<128x128xbf16>, vector<128x128xf32> -> vector<128x128xf32>
    %69 = vector.broadcast %66 : vector<1x128xf32> to vector<128x128xf32>
    %70 = arith.addf %68, %69 : vector<128x128xf32>
    %c0_42 = arith.constant 0 : index
    %c0_43 = arith.constant 0 : index
    %71 = vector.load %arg4[%c0_42, %c0_43] : memref<128x128xf32, #tpu.memory_space<vmem>>, vector<128x128xf32>
    tpu.vector_store %arg4[%c0_42, %c0_43], %70 {strides = array<i32>} : memref<128x128xf32, #tpu.memory_space<vmem>>, vector<128x128xf32>,
    return
  }
  func.func @transform_0(%arg0: i32) -> (i32, i32) {
    %c0_i32 = arith.constant 0 : i32
    %c0_i32_0 = arith.constant 0 : i32
    return %arg0, %c0_i32 : i32, i32
  }
  func.func @transform_1(%arg0: i32) -> (i32, i32) {
    %c0_i32 = arith.constant 0 : i32
    %c0_i32_0 = arith.constant 0 : i32
    %c0_i32_1 = arith.constant 0 : i32
    return %c0_i32, %c0_i32_0 : i32, i32
  }
  func.func @transform_2(%arg0: i32) -> (i32, i32) {
    %c0_i32 = arith.constant 0 : i32
    %c0_i32_0 = arith.constant 0 : i32
    %c0_i32_1 = arith.constant 0 : i32
    return %c0_i32, %c0_i32_0 : i32, i32
  }
  func.func @transform_3(%arg0: i32) -> (i32, i32) {
    %c0_i32 = arith.constant 0 : i32
    %c0_i32_0 = arith.constant 0 : i32
    return %arg0, %c0_i32 : i32, i32
  }
}

</mosaic_0001>

<llo_original>
// kernel: classifier_net_forward.1
$region0: #{classifier_net_forward.1}
  #allocation0 [shape = 'u32[]', space=smem, size = 0x4, offset = 0x4, fixed_abs, tag = 'smem constant byte address 0x4 - core index']
  #allocation1 [shape = 'u32[144,128]{1,0:T(1,128)}', space=vmem, size = 0x12000, scoped, tag = 'internal scratch']
  %s0 = inlined_call_operand.vmem [shape: f32[128,128], index: 0, kind: input, shape index: {}]
  %s1 = inlined_call_operand.hbm [shape: bf16[1664,384], index: 1, kind: input, shape index: {}]
  %s2 = inlined_call_operand.hbm [shape: f32[1,1664], index: 2, kind: input, shape index: {}]
  %s3 = inlined_call_operand.vmem [shape: f32[128,128], index: 3, kind: output, shape index: {}]
  %s4 = sld [smem:[#allocation0]]
  $region30: #{classifier_net_forward.1} parent=0
    _
  %s6 = ssub.s32 1, %s4
  %s7 = scalar_select 0, %s6, %s4
  $region1: #{classifier_net_forward.1} parent=0
    #allocation2 [shape = 'u8[1277952]{0}', space=vmem, size = 0x138000, scoped, tag = 'input window, operand 1, single buffered']
    #allocation3 [shape = 's32[1]{0}', space=sflag, size = 0x4, scoped, tag = 'scoped memory for classifier_net_forward.1']
    #allocation4 [shape = 'u8[6656]{0}', space=vmem, size = 0x1c00, scoped, tag = 'input window, operand 2, single buffered']
    #allocation5 [shape = 's32[1]{0}', space=sflag, size = 0x4, scoped, tag = 'scoped memory for classifier_net_forward.1']
    %8 = vsyncpa [#allocation3], 0
    %9 = vsyncpa [#allocation5], 0
    // Predicated region
    $region2: #{classifier_net_forward.1} parent=1 // pred_check
      _
    $region3: #{classifier_net_forward.1} parent=1 // pred_check_branch
      %11 = sbr.rel (0) target = $region5
    $region4: #{classifier_net_forward.1} parent=1 // pred_region
      _
    $region5: #{classifier_net_forward.1} parent=1 // pred_fallthru
      _
    // Predicated region
    $region6: #{classifier_net_forward.1} parent=1 // pred_check
      _
    $region7: #{classifier_net_forward.1} parent=1 // pred_check_branch
      %13 = sbr.rel (0) target = $region9
    $region8: #{classifier_net_forward.1} parent=1 // pred_region
      %s15 = ssub.s32 39936, 39936
      %16 = vsyncadd [#allocation3], %s15
      %s17 = sshll.u32 [#allocation2], 4
      %s18 = int_to_ptr.vmem [resolvable:$true] %s17
      %23 = dma.hbm_to_vmem [thread:$0]  %s1, 39936, %s18, [#allocation3], 192, 192, 12
    $region9: #{classifier_net_forward.1} parent=1 // pred_fallthru
      _
    // Predicated region
    $region10: #{classifier_net_forward.1} parent=1 // pred_check
      _
    $region11: #{classifier_net_forward.1} parent=1 // pred_check_branch
      %25 = sbr.rel (0) target = $region13
    $region12: #{classifier_net_forward.1} parent=1 // pred_region
      %s27 = ssub.s32 208, 208
      %28 = vsyncadd [#allocation5], %s27
      %s30 = sshll.u32 [#allocation4], 4
      %s31 = int_to_ptr.vmem [resolvable:$true] %s30
      %33 = dma.hbm_to_vmem [thread:$0]  %s2, 208, %s31, [#allocation5]
    $region13: #{classifier_net_forward.1} parent=1 // pred_fallthru
      _
    // Predicated region
    $region14: #{classifier_net_forward.1} parent=1 // pred_check
      _
    $region15: #{classifier_net_forward.1} parent=1 // pred_check_branch
      %35 = sbr.rel (0) target = $region17
    $region16: #{classifier_net_forward.1} parent=1 // pred_region
      %36 = dma.done [#allocation3], 39936
    $region17: #{classifier_net_forward.1} parent=1 // pred_fallthru
      _
    // Predicated region
    $region18: #{classifier_net_forward.1} parent=1 // pred_check
      _
    $region19: #{classifier_net_forward.1} parent=1 // pred_check_branch
      %38 = sbr.rel (0) target = $region21
    $region20: #{classifier_net_forward.1} parent=1 // pred_region
      %39 = dma.done [#allocation5], 208
    $region21: #{classifier_net_forward.1} parent=1 // pred_fallthru
      _
    %v41 = vld [vmem:[%s0] sm:$0xff]
    %v42 = vld [vmem:[%s0 + $0x8] sm:$0xff]
    %v43 = vld [vmem:[%s0 + $0x10] sm:$0xff]
    %v44 = vld [vmem:[%s0 + $0x18] sm:$0xff]
    %v45 = vld [vmem:[%s0 + $0x20] sm:$0xff]
    %v46 = vld [vmem:[%s0 + $0x28] sm:$0xff]
    %v47 = vld [vmem:[%s0 + $0x30] sm:$0xff]
    %v48 = vld [vmem:[%s0 + $0x38] sm:$0xff]
    %v49 = vld [vmem:[%s0 + $0x40] sm:$0xff]
    %v50 = vld [vmem:[%s0 + $0x48] sm:$0xff]
    %v51 = vld [vmem:[%s0 + $0x50] sm:$0xff]
    %v52 = vld [vmem:[%s0 + $0x58] sm:$0xff]
    %v53 = vld [vmem:[%s0 + $0x60] sm:$0xff]
    %v54 = vld [vmem:[%s0 + $0x68] sm:$0xff]
    %v55 = vld [vmem:[%s0 + $0x70] sm:$0xff]
    %v56 = vld [vmem:[%s0 + $0x78] sm:$0xff]
    %v57 = vld [vmem:[#allocation2] sm:$0xff]
    %v58 = vld [vmem:[#allocation2 + $0x8] sm:$0xf]
    %v59 = vld [vmem:[#allocation2 + $0xc] sm:$0xff]
    %v60 = vld [vmem:[#allocation2 + $0x14] sm:$0xf]
    %v61 = vld [vmem:[#allocation2 + $0x18] sm:$0xff]
    %v62 = vld [vmem:[#allocation2 + $0x20] sm:$0xf]
    %v63 = vld [vmem:[#allocation2 + $0x24] sm:$0xff]
    %v64 = vld [vmem:[#allocation2 + $0x2c] sm:$0xf]
    %v65 = vld [vmem:[#allocation2 + $0x30] sm:$0xff]
    %v66 = vld [vmem:[#allocation2 + $0x38] sm:$0xf]
    %v67 = vld [vmem:[#allocation2 + $0x3c] sm:$0xff]
    %v68 = vld [vmem:[#allocation2 + $0x44] sm:$0xf]
    %v69 = vld [vmem:[#allocation2 + $0x48] sm:$0xff]
    %v70 = vld [vmem:[#allocation2 + $0x50] sm:$0xf]
    %v71 = vld [vmem:[#allocation2 + $0x54] sm:$0xff]
    %v72 = vld [vmem:[#allocation2 + $0x5c] sm:$0xf]
    %v73 = vld [vmem:[#allocation2 + $0x60] sm:$0xff]
    %v74 = vld [vmem:[#allocation2 + $0x68] sm:$0xf]
    %v75 = vld [vmem:[#allocation2 + $0x6c] sm:$0xff]
    %v76 = vld [vmem:[#allocation2 + $0x74] sm:$0xf]
    %v77 = vld [vmem:[#allocation2 + $0x78] sm:$0xff]
    %v78 = vld [vmem:[#allocation2 + $0x80] sm:$0xf]
    %v79 = vld [vmem:[#allocation2 + $0x84] sm:$0xff]
    %v80 = vld [vmem:[#allocation2 + $0x8c] sm:$0xf]
    %v81 = vld [vmem:[#allocation2 + $0x90] sm:$0xff]
    %v82 = vld [vmem:[#allocation2 + $0x98] sm:$0xf]
    %v83 = vld [vmem:[#allocation2 + $0x9c] sm:$0xff]
    %v84 = vld [vmem:[#allocation2 + $0xa4] sm:$0xf]
    %v85 = vld [vmem:[#allocation2 + $0xa8] sm:$0xff]
    %v86 = vld [vmem:[#allocation2 + $0xb0] sm:$0xf]
    %v87 = vld [vmem:[#allocation2 + $0xb4] sm:$0xff]
    %v88 = vld [vmem:[#allocation2 + $0xbc] sm:$0xf]
    %v89 = vld [vmem:[#allocation4] sm:$0x7]
    %v90 = vpack.c.bf16 %v42, %v41
    %v91 = vpack.c.bf16 %v44, %v43
    %v92 = vpack.c.bf16 %v46, %v45
    %v93 = vpack.c.bf16 %v48, %v47
    %v94 = vpack.c.bf16 %v50, %v49
    %v95 = vpack.c.bf16 %v52, %v51
    %v96 = vpack.c.bf16 %v54, %v53
    %v97 = vpack.c.bf16 %v56, %v55
    %v99 = vlaneseq
    %v100 = vshrl.u32 %v99, 7
    %v101 = vsub.s32 0, %v100
    %v102 = vrot.slane %v89, %v101
    %v103 = vlaneseq
    %v104 = vshrl.u32 %v103, 7
    %v105 = vsub.s32 1, %v104
    %v106 = vrot.slane %v89, %v105
    %v107 = vlaneseq
    %v108 = vshrl.u32 %v107, 7
    %v109 = vsub.s32 2, %v108
    %v110 = vrot.slane %v89, %v109
    %v146 = vunpack.c.l.b16 %v57
    %v147 = vunpack.c.h.b16 %v57
    %v148 = vunpack.c.l.b16 %v58
    %v149 = vunpack.c.l.b16 %v59
    %v150 = vunpack.c.h.b16 %v59
    %v151 = vunpack.c.l.b16 %v60
    %v152 = vunpack.c.l.b16 %v61
    %v153 = vunpack.c.h.b16 %v61
    %v154 = vunpack.c.l.b16 %v62
    %v155 = vunpack.c.l.b16 %v63
    %v156 = vunpack.c.h.b16 %v63
    %v157 = vunpack.c.l.b16 %v64
    %v158 = vunpack.c.l.b16 %v65
    %v159 = vunpack.c.h.b16 %v65
    %v160 = vunpack.c.l.b16 %v66
    %v161 = vunpack.c.l.b16 %v67
    %v162 = vunpack.c.h.b16 %v67
    %v163 = vunpack.c.l.b16 %v68
    %v164 = vunpack.c.l.b16 %v69
    %v165 = vunpack.c.h.b16 %v69
    %v166 = vunpack.c.l.b16 %v70
    %v167 = vunpack.c.l.b16 %v71
    %v168 = vunpack.c.h.b16 %v71
    %v169 = vunpack.c.l.b16 %v72
    %v170 = vunpack.c.l.b16 %v73
    %v171 = vunpack.c.h.b16 %v73
    %v172 = vunpack.c.l.b16 %v74
    %v173 = vunpack.c.l.b16 %v75
    %v174 = vunpack.c.h.b16 %v75
    %v175 = vunpack.c.l.b16 %v76
    %v176 = vunpack.c.l.b16 %v77
    %v177 = vunpack.c.h.b16 %v77
    %v178 = vunpack.c.l.b16 %v78
    %v179 = vunpack.c.l.b16 %v79
    %v180 = vunpack.c.h.b16 %v79
    %v181 = vunpack.c.l.b16 %v80
    %v182 = vunpack.c.l.b16 %v81
    %v183 = vunpack.c.h.b16 %v81
    %v184 = vunpack.c.l.b16 %v82
    %v185 = vunpack.c.l.b16 %v83
    %v186 = vunpack.c.h.b16 %v83
    %v187 = vunpack.c.l.b16 %v84
    %v188 = vunpack.c.l.b16 %v85
    %v189 = vunpack.c.h.b16 %v85
    %v190 = vunpack.c.l.b16 %v86
    %v191 = vunpack.c.l.b16 %v87
    %v192 = vunpack.c.h.b16 %v87
    %v193 = vunpack.c.l.b16 %v88
    %v194 = vpack.c.b16 %v149, %v146
    %v195 = vpack.c.b16 %v150, %v147
    %v196 = vpack.c.b16 %v151, %v148
    %v197 = vpack.c.b16 %v155, %v152
    %v198 = vpack.c.b16 %v156, %v153
    %v199 = vpack.c.b16 %v157, %v154
    %v200 = vpack.c.b16 %v161, %v158
    %v201 = vpack.c.b16 %v162, %v159
    %v202 = vpack.c.b16 %v163, %v160
    %v203 = vpack.c.b16 %v167, %v164
    %v204 = vpack.c.b16 %v168, %v165
    %v205 = vpack.c.b16 %v169, %v166
    %v206 = vpack.c.b16 %v173, %v170
    %v207 = vpack.c.b16 %v174, %v171
    %v208 = vpack.c.b16 %v175, %v172
    %v209 = vpack.c.b16 %v179, %v176
    %v210 = vpack.c.b16 %v180, %v177
    %v211 = vpack.c.b16 %v181, %v178
    %v212 = vpack.c.b16 %v185, %v182
    %v213 = vpack.c.b16 %v186, %v183
    %v214 = vpack.c.b16 %v187, %v184
    %v215 = vpack.c.b16 %v191, %v188
    %v216 = vpack.c.b16 %v192, %v189
    %v217 = vpack.c.b16 %v193, %v190
    %242 = vmatprep.subr.bf16.mxu0 %v195
    %243 = vmatpush1.bf16.msra.mxu0 %v194
    %244 = vmatprep.subr.bf16.mxu0 %v198
    %245 = vmatpush1.bf16.msra.mxu0 %v197
    %246 = vmatprep.subr.bf16.mxu0 %v201
    %247 = vmatpush1.bf16.msra.mxu0 %v200
    %248 = vmatprep.subr.bf16.mxu0 %v204
    %249 = vmatpush1.bf16.msra.mxu0 %v203
    %250 = vmatprep.subr.bf16.mxu0 %v207
    %251 = vmatpush1.bf16.msra.mxu0 %v206
    %252 = vmatprep.subr.bf16.mxu0 %v210
    %253 = vmatpush1.bf16.msra.mxu0 %v209
    %254 = vmatprep.subr.bf16.mxu0 %v213
    %255 = vmatpush1.bf16.msra.mxu0 %v212
    %256 = vmatprep.subr.bf16.mxu0 %v216
    %257 = vmatpush1.bf16.msra.mxu0 %v215
    %258 = vmatprep.subr.bf16.mxu0 0
    %259 = vmatpush1.bf16.msra.mxu0 0
    %260 = vmatprep.subr.bf16.mxu0 0
    %261 = vmatpush1.bf16.msra.mxu0 0
    %262 = vmatprep.subr.bf16.mxu0 0
    %263 = vmatpush1.bf16.msra.mxu0 0
    %264 = vmatprep.subr.bf16.mxu0 0
    %265 = vmatpush1.bf16.msra.mxu0 0
    %266 = vmatprep.subr.bf16.mxu0 0
    %267 = vmatpush1.bf16.msra.mxu0 0
    %268 = vmatprep.subr.bf16.mxu0 0
    %269 = vmatpush1.bf16.msra.mxu0 0
    %270 = vmatprep.subr.bf16.mxu0 0
    %271 = vmatpush1.bf16.msra.mxu0 0
    %272 = vmatprep.subr.bf16.mxu0 0
    %273 = vmatpush1.bf16.msra.mxu0 0
    %274 = vmatprep.mubr.bf16.mxu0 0
    %275 = vmatmul.mubr.bf16.gmra.mrb[0].mxu0 %v90
    %v276 = vpop.f32.mrb[0].mxu0
    %v277 = vadd.f32 %v102, %v276
    %v278 = vpop.f32.mrb[0].mxu0
    %v279 = vadd.f32 %v106, %v278
    %v280 = vpop.f32.mrb[0].mxu0
    %v281 = vadd.f32 %v102, %v280
    %v282 = vpop.f32.mrb[0].mxu0
    %v283 = vadd.f32 %v106, %v282
    %284 = vmatprep.mubr.bf16.mxu0 0
    %285 = vmatmul.mubr.bf16.gmra.mrb[0].mxu0 %v91
    %v286 = vpop.f32.mrb[0].mxu0
    %v287 = vadd.f32 %v102, %v286
    %v288 = vpop.f32.mrb[0].mxu0
    %v289 = vadd.f32 %v106, %v288
    %v290 = vpop.f32.mrb[0].mxu0
    %v291 = vadd.f32 %v102, %v290
    %v292 = vpop.f32.mrb[0].mxu0
    %v293 = vadd.f32 %v106, %v292
    %294 = vmatprep.mubr.bf16.mxu0 0
    %295 = vmatmul.mubr.bf16.gmra.mrb[0].mxu0 %v92
    %v296 = vpop.f32.mrb[0].mxu0
    %v297 = vadd.f32 %v102, %v296
    %v298 = vpop.f32.mrb[0].mxu0
    %v299 = vadd.f32 %v106, %v298
    %v300 = vpop.f32.mrb[0].mxu0
    %v301 = vadd.f32 %v102, %v300
    %v302 = vpop.f32.mrb[0].mxu0
    %v303 = vadd.f32 %v106, %v302
    %304 = vmatprep.mubr.bf16.mxu0 0
    %305 = vmatmul.mubr.bf16.gmra.mrb[0].mxu0 %v93
    %v306 = vpop.f32.mrb[0].mxu0
    %v307 = vadd.f32 %v102, %v306
    %v308 = vpop.f32.mrb[0].mxu0
    %v309 = vadd.f32 %v106, %v308
    %v310 = vpop.f32.mrb[0].mxu0
    %v311 = vadd.f32 %v102, %v310
    %v312 = vpop.f32.mrb[0].mxu0
    %v313 = vadd.f32 %v106, %v312
    %314 = vmatprep.mubr.bf16.mxu0 0
    %315 = vmatmul.mubr.bf16.gmra.mrb[0].mxu0 %v94
    %v316 = vpop.f32.mrb[0].mxu0
    %v317 = vadd.f32 %v102, %v316
    %v318 = vpop.f32.mrb[0].mxu0
    %v319 = vadd.f32 %v106, %v318
    %v320 = vpop.f32.mrb[0].mxu0
    %v321 = vadd.f32 %v102, %v320
    %v322 = vpop.f32.mrb[0].mxu0
    %v323 = vadd.f32 %v106, %v322
    %324 = vmatprep.mubr.bf16.mxu0 0
    %325 = vmatmul.mubr.bf16.gmra.mrb[0].mxu0 %v95
    %v326 = vpop.f32.mrb[0].mxu0
    %v327 = vadd.f32 %v102, %v326
    %v328 = vpop.f32.mrb[0].mxu0
    %v329 = vadd.f32 %v106, %v328
    %v330 = vpop.f32.mrb[0].mxu0
    %v331 = vadd.f32 %v102, %v330
    %v332 = vpop.f32.mrb[0].mxu0
    %v333 = vadd.f32 %v106, %v332
    %334 = vmatprep.mubr.bf16.mxu0 0
    %335 = vmatmul.mubr.bf16.gmra.mrb[0].mxu0 %v96
    %v336 = vpop.f32.mrb[0].mxu0
    %v337 = vadd.f32 %v102, %v336
    %v338 = vpop.f32.mrb[0].mxu0
    %v339 = vadd.f32 %v106, %v338
    %v340 = vpop.f32.mrb[0].mxu0
    %v341 = vadd.f32 %v102, %v340
    %v342 = vpop.f32.mrb[0].mxu0
    %v343 = vadd.f32 %v106, %v342
    %344 = vmatprep.mubr.bf16.mxu0 0
    %345 = vmatmul.mubr.bf16.gmra.mrb[0].mxu0 %v97
    %v346 = vpop.f32.mrb[0].mxu0
    %v347 = vadd.f32 %v102, %v346
    %v348 = vpop.f32.mrb[0].mxu0
    %v349 = vadd.f32 %v106, %v348
    %v350 = vpop.f32.mrb[0].mxu0
    %v351 = vadd.f32 %v102, %v350
    %v352 = vpop.f32.mrb[0].mxu0
    %v353 = vadd.f32 %v106, %v352
    %354 = vdwg.mxu0
    %355 = vmatprep.subr.bf16.mxu0 0
    %356 = vmatpush1.bf16.msra.mxu0 %v196
    %357 = vmatprep.subr.bf16.mxu0 0
    %358 = vmatpush1.bf16.msra.mxu0 %v199
    %359 = vmatprep.subr.bf16.mxu0 0
    %360 = vmatpush1.bf16.msra.mxu0 %v202
    %361 = vmatprep.subr.bf16.mxu0 0
    %362 = vmatpush1.bf16.msra.mxu0 %v205
    %363 = vmatprep.subr.bf16.mxu0 0
    %364 = vmatpush1.bf16.msra.mxu0 %v208
    %365 = vmatprep.subr.bf16.mxu0 0
    %366 = vmatpush1.bf16.msra.mxu0 %v211
    %367 = vmatprep.subr.bf16.mxu0 0
    %368 = vmatpush1.bf16.msra.mxu0 %v214
    %369 = vmatprep.subr.bf16.mxu0 0
    %370 = vmatpush1.bf16.msra.mxu0 %v217
    %371 = vmatprep.subr.bf16.mxu0 0
    %372 = vmatpush1.bf16.msra.mxu0 0
    %373 = vmatprep.subr.bf16.mxu0 0
    %374 = vmatpush1.bf16.msra.mxu0 0
    %375 = vmatprep.subr.bf16.mxu0 0
    %376 = vmatpush1.bf16.msra.mxu0 0
    %377 = vmatprep.subr.bf16.mxu0 0
    %378 = vmatpush1.bf16.msra.mxu0 0
    %379 = vmatprep.subr.bf16.mxu0 0
    %380 = vmatpush1.bf16.msra.mxu0 0
    %381 = vmatprep.subr.bf16.mxu0 0
    %382 = vmatpush1.bf16.msra.mxu0 0
    %383 = vmatprep.subr.bf16.mxu0 0
    %384 = vmatpush1.bf16.msra.mxu0 0
    %385 = vmatprep.subr.bf16.mxu0 0
    %386 = vmatpush1.bf16.msra.mxu0 0
    %387 = vmatprep.mubr.bf16.mxu0 0
    %388 = vmatmul.mubr.bf16.gmra.mrb[0].mxu0 %v90
    %v389 = vpop.f32.mrb[0].mxu0
    %v390 = vadd.f32 %v110, %v389
    %v391 = vpop.f32.mrb[0].mxu0
    %v392 = vpop.f32.mrb[0].mxu0
    %v393 = vadd.f32 %v110, %v392
    %v394 = vpop.f32.mrb[0].mxu0
    %395 = vmatprep.mubr.bf16.mxu0 0
    %396 = vmatmul.mubr.bf16.gmra.mrb[0].mxu0 %v91
    %v397 = vpop.f32.mrb[0].mxu0
    %v398 = vadd.f32 %v110, %v397
    %v399 = vpop.f32.mrb[0].mxu0
    %v400 = vpop.f32.mrb[0].mxu0
    %v401 = vadd.f32 %v110, %v400
    %v402 = vpop.f32.mrb[0].mxu0
    %403 = vmatprep.mubr.bf16.mxu0 0
    %404 = vmatmul.mubr.bf16.gmra.mrb[0].mxu0 %v92
    %v405 = vpop.f32.mrb[0].mxu0
    %v406 = vadd.f32 %v110, %v405
    %v407 = vpop.f32.mrb[0].mxu0
    %v408 = vpop.f32.mrb[0].mxu0
    %v409 = vadd.f32 %v110, %v408
    %v410 = vpop.f32.mrb[0].mxu0
    %411 = vmatprep.mubr.bf16.mxu0 0
    %412 = vmatmul.mubr.bf16.gmra.mrb[0].mxu0 %v93
    %v413 = vpop.f32.mrb[0].mxu0
    %v414 = vadd.f32 %v110, %v413
    %v415 = vpop.f32.mrb[0].mxu0
    %v416 = vpop.f32.mrb[0].mxu0
    %v417 = vadd.f32 %v110, %v416
    %v418 = vpop.f32.mrb[0].mxu0
    %419 = vmatprep.mubr.bf16.mxu0 0
    %420 = vmatmul.mubr.bf16.gmra.mrb[0].mxu0 %v94
    %v421 = vpop.f32.mrb[0].mxu0
    %v422 = vadd.f32 %v110, %v421
    %v423 = vpop.f32.mrb[0].mxu0
    %v424 = vpop.f32.mrb[0].mxu0
    %v425 = vadd.f32 %v110, %v424
    %v426 = vpop.f32.mrb[0].mxu0
    %427 = vmatprep.mubr.bf16.mxu0 0
    %428 = vmatmul.mubr.bf16.gmra.mrb[0].mxu0 %v95
    %v429 = vpop.f32.mrb[0].mxu0
    %v430 = vadd.f32 %v110, %v429
    %v431 = vpop.f32.mrb[0].mxu0
    %v432 = vpop.f32.mrb[0].mxu0
    %v433 = vadd.f32 %v110, %v432
    %v434 = vpop.f32.mrb[0].mxu0
    %435 = vmatprep.mubr.bf16.mxu0 0
    %436 = vmatmul.mubr.bf16.gmra.mrb[0].mxu0 %v96
    %v437 = vpop.f32.mrb[0].mxu0
    %v438 = vadd.f32 %v110, %v437
    %v439 = vpop.f32.mrb[0].mxu0
    %v440 = vpop.f32.mrb[0].mxu0
    %v441 = vadd.f32 %v110, %v440
    %v442 = vpop.f32.mrb[0].mxu0
    %443 = vmatprep.mubr.bf16.mxu0 0
    %444 = vmatmul.mubr.bf16.gmra.mrb[0].mxu0 %v97
    %v445 = vpop.f32.mrb[0].mxu0
    %v446 = vadd.f32 %v110, %v445
    %v447 = vpop.f32.mrb[0].mxu0
    %v448 = vpop.f32.mrb[0].mxu0
    %v449 = vadd.f32 %v110, %v448
    %v450 = vpop.f32.mrb[0].mxu0
    %451 = vdwg.mxu0
    %v452 = vmax.f32 %v277, 0.0
    %v453 = vmax.f32 %v279, 0.0
    %v454 = vmax.f32 %v390, 0.0
    %v455 = vmax.f32 %v281, 0.0
    %v456 = vmax.f32 %v283, 0.0
    %v457 = vmax.f32 %v393, 0.0
    %v458 = vmax.f32 %v287, 0.0
    %v459 = vmax.f32 %v289, 0.0
    %v460 = vmax.f32 %v398, 0.0
    %v461 = vmax.f32 %v291, 0.0
    %v462 = vmax.f32 %v293, 0.0
    %v463 = vmax.f32 %v401, 0.0
    %v464 = vmax.f32 %v297, 0.0
    %v465 = vmax.f32 %v299, 0.0
    %v466 = vmax.f32 %v406, 0.0
    %v467 = vmax.f32 %v301, 0.0
    %v468 = vmax.f32 %v303, 0.0
    %v469 = vmax.f32 %v409, 0.0
    %v470 = vmax.f32 %v307, 0.0
    %v471 = vmax.f32 %v309, 0.0
    %v472 = vmax.f32 %v414, 0.0
    %v473 = vmax.f32 %v311, 0.0
    %v474 = vmax.f32 %v313, 0.0
    %v475 = vmax.f32 %v417, 0.0
    %v476 = vmax.f32 %v317, 0.0
    %v477 = vmax.f32 %v319, 0.0
    %v478 = vmax.f32 %v422, 0.0
    %v479 = vmax.f32 %v321, 0.0
    %v480 = vmax.f32 %v323, 0.0
    %v481 = vmax.f32 %v425, 0.0
    %v482 = vmax.f32 %v327, 0.0
    %v483 = vmax.f32 %v329, 0.0
    %v484 = vmax.f32 %v430, 0.0
    %v485 = vmax.f32 %v331, 0.0
    %v486 = vmax.f32 %v333, 0.0
    %v487 = vmax.f32 %v433, 0.0
    %v488 = vmax.f32 %v337, 0.0
    %v489 = vmax.f32 %v339, 0.0
    %v490 = vmax.f32 %v438, 0.0
    %v491 = vmax.f32 %v341, 0.0
    %v492 = vmax.f32 %v343, 0.0
    %v493 = vmax.f32 %v441, 0.0
    %v494 = vmax.f32 %v347, 0.0
    %v495 = vmax.f32 %v349, 0.0
    %v496 = vmax.f32 %v446, 0.0
    %v497 = vmax.f32 %v351, 0.0
    %v498 = vmax.f32 %v353, 0.0
    %v499 = vmax.f32 %v449, 0.0
    %v500 = vld [vmem:[#allocation2 + $0xc0] sm:$0xff]
    %v501 = vld [vmem:[#allocation2 + $0xcc] sm:$0xff]
    %v502 = vld [vmem:[#allocation2 + $0xd8] sm:$0xff]
    %v503 = vld [vmem:[#allocation2 + $0xe4] sm:$0xff]
    %v504 = vld [vmem:[#allocation2 + $0xf0] sm:$0xff]
    %v505 = vld [vmem:[#allocation2 + $0xfc] sm:$0xff]
    %v506 = vld [vmem:[#allocation2 + $0x108] sm:$0xff]
    %v507 = vld [vmem:[#allocation2 + $0x114] sm:$0xff]
    %v508 = vld [vmem:[#allocation2 + $0x120] sm:$0xff]
    %v509 = vld [vmem:[#allocation2 + $0x12c] sm:$0xff]
    %v510 = vld [vmem:[#allocation2 + $0x138] sm:$0xff]
    %v511 = vld [vmem:[#allocation2 + $0x144] sm:$0xff]
    %v512 = vld [vmem:[#allocation2 + $0x150] sm:$0xff]
    %v513 = vld [vmem:[#allocation2 + $0x15c] sm:$0xff]
    %v514 = vld [vmem:[#allocation2 + $0x168] sm:$0xff]
    %v515 = vld [vmem:[#allocation2 + $0x174] sm:$0xff]
    %v516 = vld [vmem:[#allocation2 + $0x180] sm:$0xff]
    %v517 = vld [vmem:[#allocation2 + $0x18c] sm:$0xff]
    %v518 = vld [vmem:[#allocation2 + $0x198] sm:$0xff]
    %v519 = vld [vmem:[#allocation2 + $0x1a4] sm:$0xff]
    %v520 = vld [vmem:[#allocation2 + $0x1b0] sm:$0xff]
    %v521 = vld [vmem:[#allocation2 + $0x1bc] sm:$0xff]
    %v522 = vld [vmem:[#allocation2 + $0x1c8] sm:$0xff]
    %v523 = vld [vmem:[#allocation2 + $0x1d4] sm:$0xff]
    %v524 = vld [vmem:[#allocation2 + $0x1e0] sm:$0xff]
    %v525 = vld [vmem:[#allocation2 + $0x1ec] sm:$0xff]
    %v526 = vld [vmem:[#allocation2 + $0x1f8] sm:$0xff]
    %v527 = vld [vmem:[#allocation2 + $0x204] sm:$0xff]
    %v528 = vld [vmem:[#allocation2 + $0x210] sm:$0xff]
    %v529 = vld [vmem:[#allocation2 + $0x21c] sm:$0xff]
    %v530 = vld [vmem:[#allocation2 + $0x228] sm:$0xff]
    %v531 = vld [vmem:[#allocation2 + $0x234] sm:$0xff]
    %v532 = vld [vmem:[#allocation2 + $0x240] sm:$0xff]
    %v533 = vld [vmem:[#allocation2 + $0x24c] sm:$0xff]
    %v534 = vld [vmem:[#allocation2 + $0x258] sm:$0xff]
    %v535 = vld [vmem:[#allocation2 + $0x264] sm:$0xff]
    %v536 = vld [vmem:[#allocation2 + $0x270] sm:$0xff]
    %v537 = vld [vmem:[#allocation2 + $0x27c] sm:$0xff]
    %v538 = vld [vmem:[#allocation2 + $0x288] sm:$0xff]
    %v539 = vld [vmem:[#allocation2 + $0x294] sm:$0xff]
    %v540 = vld [vmem:[#allocation2 + $0x2a0] sm:$0xff]
    %v541 = vld [vmem:[#allocation2 + $0x2ac] sm:$0xff]
    %v542 = vld [vmem:[#allocation2 + $0x2b8] sm:$0xff]
    %v543 = vld [vmem:[#allocation2 + $0x2c4] sm:$0xff]
    %v544 = vld [vmem:[#allocation2 + $0x2d0] sm:$0xff]
    %v545 = vld [vmem:[#allocation2 + $0x2dc] sm:$0xff]
    %v546 = vld [vmem:[#allocation2 + $0x2e8] sm:$0xff]
    %v547 = vld [vmem:[#allocation2 + $0x2f4] sm:$0xff]
    %v548 = vld [vmem:[#allocation4 + $0x3] sm:$0x3]
    %v549 = vpack.c.bf16 %v455, %v452
    %v550 = vpack.c.bf16 %v456, %v453
    %v551 = vpack.c.bf16 %v457, %v454
    %v552 = vpack.c.bf16 %v461, %v458
    %v553 = vpack.c.bf16 %v462, %v459
    %v554 = vpack.c.bf16 %v463, %v460
    %v555 = vpack.c.bf16 %v467, %v464
    %v556 = vpack.c.bf16 %v468, %v465
    %v557 = vpack.c.bf16 %v469, %v466
    %v558 = vpack.c.bf16 %v473, %v470
    %v559 = vpack.c.bf16 %v474, %v471
    %v560 = vpack.c.bf16 %v475, %v472
    %v561 = vpack.c.bf16 %v479, %v476
    %v562 = vpack.c.bf16 %v480, %v477
    %v563 = vpack.c.bf16 %v481, %v478
    %v564 = vpack.c.bf16 %v485, %v482
    %v565 = vpack.c.bf16 %v486, %v483
    %v566 = vpack.c.bf16 %v487, %v484
    %v567 = vpack.c.bf16 %v491, %v488
    %v568 = vpack.c.bf16 %v492, %v489
    %v569 = vpack.c.bf16 %v493, %v490
    %v570 = vpack.c.bf16 %v497, %v494
    %v571 = vpack.c.bf16 %v498, %v495
    %v572 = vpack.c.bf16 %v499, %v496
    %v574 = vlaneseq
    %v575 = vshrl.u32 %v574, 7
    %v576 = vsub.s32 0, %v575
    %v577 = vrot.slane %v548, %v576
    %v578 = vlaneseq
    %v579 = vshrl.u32 %v578, 7
    %v580 = vsub.s32 1, %v579
    %v581 = vrot.slane %v548, %v580
    %v632 = vunpack.c.l.b16 %v500
    %v633 = vunpack.c.h.b16 %v500
    %v634 = vunpack.c.l.b16 %v501
    %v635 = vunpack.c.h.b16 %v501
    %v636 = vunpack.c.l.b16 %v502
    %v637 = vunpack.c.h.b16 %v502
    %v638 = vunpack.c.l.b16 %v503
    %v639 = vunpack.c.h.b16 %v503
    %v640 = vunpack.c.l.b16 %v504
    %v641 = vunpack.c.h.b16 %v504
    %v642 = vunpack.c.l.b16 %v505
    %v643 = vunpack.c.h.b16 %v505
    %v644 = vunpack.c.l.b16 %v506
    %v645 = vunpack.c.h.b16 %v506
    %v646 = vunpack.c.l.b16 %v507
    %v647 = vunpack.c.h.b16 %v507
    %v648 = vunpack.c.l.b16 %v508
    %v649 = vunpack.c.h.b16 %v508
    %v650 = vunpack.c.l.b16 %v509
    %v651 = vunpack.c.h.b16 %v509
    %v652 = vunpack.c.l.b16 %v510
    %v653 = vunpack.c.h.b16 %v510
    %v654 = vunpack.c.l.b16 %v511
    %v655 = vunpack.c.h.b16 %v511
    %v656 = vunpack.c.l.b16 %v512
    %v657 = vunpack.c.h.b16 %v512
    %v658 = vunpack.c.l.b16 %v513
    %v659 = vunpack.c.h.b16 %v513
    %v660 = vunpack.c.l.b16 %v514
    %v661 = vunpack.c.h.b16 %v514
    %v662 = vunpack.c.l.b16 %v515
    %v663 = vunpack.c.h.b16 %v515
    %v664 = vunpack.c.l.b16 %v516
    %v665 = vunpack.c.h.b16 %v516
    %v666 = vunpack.c.l.b16 %v517
    %v667 = vunpack.c.h.b16 %v517
    %v668 = vunpack.c.l.b16 %v518
    %v669 = vunpack.c.h.b16 %v518
    %v670 = vunpack.c.l.b16 %v519
    %v671 = vunpack.c.h.b16 %v519
    %v672 = vunpack.c.l.b16 %v520
    %v673 = vunpack.c.h.b16 %v520
    %v674 = vunpack.c.l.b16 %v521
    %v675 = vunpack.c.h.b16 %v521
    %v676 = vunpack.c.l.b16 %v522
    %v677 = vunpack.c.h.b16 %v522
    %v678 = vunpack.c.l.b16 %v523
    %v679 = vunpack.c.h.b16 %v523
    %v680 = vunpack.c.l.b16 %v524
    %v681 = vunpack.c.h.b16 %v524
    %v682 = vunpack.c.l.b16 %v525
    %v683 = vunpack.c.h.b16 %v525
    %v684 = vunpack.c.l.b16 %v526
    %v685 = vunpack.c.h.b16 %v526
    %v686 = vunpack.c.l.b16 %v527
    %v687 = vunpack.c.h.b16 %v527
    %v688 = vunpack.c.l.b16 %v528
    %v689 = vunpack.c.h.b16 %v528
    %v690 = vunpack.c.l.b16 %v529
    %v691 = vunpack.c.h.b16 %v529
    %v692 = vunpack.c.l.b16 %v530
    %v693 = vunpack.c.h.b16 %v530
    %v694 = vunpack.c.l.b16 %v531
    %v695 = vunpack.c.h.b16 %v531
    %v696 = vunpack.c.l.b16 %v532
    %v697 = vunpack.c.h.b16 %v532
    %v698 = vunpack.c.l.b16 %v533
    %v699 = vunpack.c.h.b16 %v533
    %v700 = vunpack.c.l.b16 %v534
    %v701 = vunpack.c.h.b16 %v534
    %v702 = vunpack.c.l.b16 %v535
    %v703 = vunpack.c.h.b16 %v535
    %v704 = vunpack.c.l.b16 %v536
    %v705 = vunpack.c.h.b16 %v536
    %v706 = vunpack.c.l.b16 %v537
    %v707 = vunpack.c.h.b16 %v537
    %v708 = vunpack.c.l.b16 %v538
    %v709 = vunpack.c.h.b16 %v538
    %v710 = vunpack.c.l.b16 %v539
    %v711 = vunpack.c.h.b16 %v539
    %v712 = vunpack.c.l.b16 %v540
    %v713 = vunpack.c.h.b16 %v540
    %v714 = vunpack.c.l.b16 %v541
    %v715 = vunpack.c.h.b16 %v541
    %v716 = vunpack.c.l.b16 %v542
    %v717 = vunpack.c.h.b16 %v542
    %v718 = vunpack.c.l.b16 %v543
    %v719 = vunpack.c.h.b16 %v543
    %v720 = vunpack.c.l.b16 %v544
    %v721 = vunpack.c.h.b16 %v544
    %v722 = vunpack.c.l.b16 %v545
    %v723 = vunpack.c.h.b16 %v545
    %v724 = vunpack.c.l.b16 %v546
    %v725 = vunpack.c.h.b16 %v546
    %v726 = vunpack.c.l.b16 %v547
    %v727 = vunpack.c.h.b16 %v547
    %v728 = vpack.c.b16 %v634, %v632
    %v729 = vpack.c.b16 %v635, %v633
    %v730 = vpack.c.b16 %v638, %v636
    %v731 = vpack.c.b16 %v639, %v637
    %v732 = vpack.c.b16 %v642, %v640
    %v733 = vpack.c.b16 %v643, %v641
    %v734 = vpack.c.b16 %v646, %v644
    %v735 = vpack.c.b16 %v647, %v645
    %v736 = vpack.c.b16 %v650, %v648
    %v737 = vpack.c.b16 %v651, %v649
    %v738 = vpack.c.b16 %v654, %v652
    %v739 = vpack.c.b16 %v655, %v653
    %v740 = vpack.c.b16 %v658, %v656
    %v741 = vpack.c.b16 %v659, %v657
    %v742 = vpack.c.b16 %v662, %v660
    %v743 = vpack.c.b16 %v663, %v661
    %v744 = vpack.c.b16 %v666, %v664
    %v745 = vpack.c.b16 %v667, %v665
    %v746 = vpack.c.b16 %v670, %v668
    %v747 = vpack.c.b16 %v671, %v669
    %v748 = vpack.c.b16 %v674, %v672
    %v749 = vpack.c.b16 %v675, %v673
    %v750 = vpack.c.b16 %v678, %v676
    %v751 = vpack.c.b16 %v679, %v677
    %v752 = vpack.c.b16 %v682, %v680
    %v753 = vpack.c.b16 %v683, %v681
    %v754 = vpack.c.b16 %v686, %v684
    %v755 = vpack.c.b16 %v687, %v685
    %v756 = vpack.c.b16 %v690, %v688
    %v757 = vpack.c.b16 %v691, %v689
    %v758 = vpack.c.b16 %v694, %v692
    %v759 = vpack.c.b16 %v695, %v693
    %v760 = vpack.c.b16 %v698, %v696
    %v761 = vpack.c.b16 %v699, %v697
    %v762 = vpack.c.b16 %v702, %v700
    %v763 = vpack.c.b16 %v703, %v701
    %v764 = vpack.c.b16 %v706, %v704
    %v765 = vpack.c.b16 %v707, %v705
    %v766 = vpack.c.b16 %v710, %v708
    %v767 = vpack.c.b16 %v711, %v709
    %v768 = vpack.c.b16 %v714, %v712
    %v769 = vpack.c.b16 %v715, %v713
    %v770 = vpack.c.b16 %v718, %v716
    %v771 = vpack.c.b16 %v719, %v717
    %v772 = vpack.c.b16 %v722, %v720
    %v773 = vpack.c.b16 %v723, %v721
    %v774 = vpack.c.b16 %v726, %v724
    %v775 = vpack.c.b16 %v727, %v725
    %824 = vmatprep.subr.bf16.mxu0 %v729
    %825 = vmatpush1.bf16.msra.mxu0 %v728
    %826 = vmatprep.subr.bf16.mxu0 %v731
    %827 = vmatpush1.bf16.msra.mxu0 %v730
    %828 = vmatprep.subr.bf16.mxu0 %v733
    %829 = vmatpush1.bf16.msra.mxu0 %v732
    %830 = vmatprep.subr.bf16.mxu0 %v735
    %831 = vmatpush1.bf16.msra.mxu0 %v734
    %832 = vmatprep.subr.bf16.mxu0 %v737
    %833 = vmatpush1.bf16.msra.mxu0 %v736
    %834 = vmatprep.subr.bf16.mxu0 %v739
    %835 = vmatpush1.bf16.msra.mxu0 %v738
    %836 = vmatprep.subr.bf16.mxu0 %v741
    %837 = vmatpush1.bf16.msra.mxu0 %v740
    %838 = vmatprep.subr.bf16.mxu0 %v743
    %839 = vmatpush1.bf16.msra.mxu0 %v742
    %840 = vmatprep.subr.bf16.mxu0 %v745
    %841 = vmatpush1.bf16.msra.mxu0 %v744
    %842 = vmatprep.subr.bf16.mxu0 %v747
    %843 = vmatpush1.bf16.msra.mxu0 %v746
    %844 = vmatprep.subr.bf16.mxu0 %v749
    %845 = vmatpush1.bf16.msra.mxu0 %v748
    %846 = vmatprep.subr.bf16.mxu0 %v751
    %847 = vmatpush1.bf16.msra.mxu0 %v750
    %848 = vmatprep.subr.bf16.mxu0 %v753
    %849 = vmatpush1.bf16.msra.mxu0 %v752
    %850 = vmatprep.subr.bf16.mxu0 %v755
    %851 = vmatpush1.bf16.msra.mxu0 %v754
    %852 = vmatprep.subr.bf16.mxu0 %v757
    %853 = vmatpush1.bf16.msra.mxu0 %v756
    %854 = vmatprep.subr.bf16.mxu0 %v759
    %855 = vmatpush1.bf16.msra.mxu0 %v758
    %856 = vmatprep.mubr.bf16.mxu0 %v550
    %857 = vmatmul.mubr.bf16.gmra.mrb[0].mxu0 %v549
    %v858 = vpop.f32.mrb[0].mxu0
    %v859 = vadd.f32 %v577, %v858
    %v860 = vpop.f32.mrb[0].mxu0
    %v861 = vadd.f32 %v581, %v860
    %v862 = vpop.f32.mrb[0].mxu0
    %v863 = vadd.f32 %v577, %v862
    %v864 = vpop.f32.mrb[0].mxu0
    %v865 = vadd.f32 %v581, %v864
    %866 = vmatprep.mubr.bf16.mxu0 %v553
    %867 = vmatmul.mubr.bf16.gmra.mrb[0].mxu0 %v552
    %v868 = vpop.f32.mrb[0].mxu0
    %v869 = vadd.f32 %v577, %v868
    %v870 = vpop.f32.mrb[0].mxu0
    %v871 = vadd.f32 %v581, %v870
    %v872 = vpop.f32.mrb[0].mxu0
    %v873 = vadd.f32 %v577, %v872
    %v874 = vpop.f32.mrb[0].mxu0
    %v875 = vadd.f32 %v581, %v874
    %876 = vmatprep.mubr.bf16.mxu0 %v556
    %877 = vmatmul.mubr.bf16.gmra.mrb[0].mxu0 %v555
    %v878 = vpop.f32.mrb[0].mxu0
    %v879 = vadd.f32 %v577, %v878
    %v880 = vpop.f32.mrb[0].mxu0
    %v881 = vadd.f32 %v581, %v880
    %v882 = vpop.f32.mrb[0].mxu0
    %v883 = vadd.f32 %v577, %v882
    %v884 = vpop.f32.mrb[0].mxu0
    %v885 = vadd.f32 %v581, %v884
    %886 = vmatprep.mubr.bf16.mxu0 %v559
    %887 = vmatmul.mubr.bf16.gmra.mrb[0].mxu0 %v558
    %v888 = vpop.f32.mrb[0].mxu0
    %v889 = vadd.f32 %v577, %v888
    %v890 = vpop.f32.mrb[0].mxu0
    %v891 = vadd.f32 %v581, %v890
    %v892 = vpop.f32.mrb[0].mxu0
    %v893 = vadd.f32 %v577, %v892
    %v894 = vpop.f32.mrb[0].mxu0
    %v895 = vadd.f32 %v581, %v894
    %896 = vmatprep.mubr.bf16.mxu0 %v562
    %897 = vmatmul.mubr.bf16.gmra.mrb[0].mxu0 %v561
    %v898 = vpop.f32.mrb[0].mxu0
    %v899 = vadd.f32 %v577, %v898
    %v900 = vpop.f32.mrb[0].mxu0
    %v901 = vadd.f32 %v581, %v900
    %v902 = vpop.f32.mrb[0].mxu0
    %v903 = vadd.f32 %v577, %v902
    %v904 = vpop.f32.mrb[0].mxu0
    %v905 = vadd.f32 %v581, %v904
    %906 = vmatprep.mubr.bf16.mxu0 %v565
    %907 = vmatmul.mubr.bf16.gmra.mrb[0].mxu0 %v564
    %v908 = vpop.f32.mrb[0].mxu0
    %v909 = vadd.f32 %v577, %v908
    %v910 = vpop.f32.mrb[0].mxu0
    %v911 = vadd.f32 %v581, %v910
    %v912 = vpop.f32.mrb[0].mxu0
    %v913 = vadd.f32 %v577, %v912
    %v914 = vpop.f32.mrb[0].mxu0
    %v915 = vadd.f32 %v581, %v914
    %916 = vmatprep.mubr.bf16.mxu0 %v568
    %917 = vmatmul.mubr.bf16.gmra.mrb[0].mxu0 %v567
    %v918 = vpop.f32.mrb[0].mxu0
    %v919 = vadd.f32 %v577, %v918
    %v920 = vpop.f32.mrb[0].mxu0
    %v921 = vadd.f32 %v581, %v920
    %v922 = vpop.f32.mrb[0].mxu0
    %v923 = vadd.f32 %v577, %v922
    %v924 = vpop.f32.mrb[0].mxu0
    %v925 = vadd.f32 %v581, %v924
    %926 = vmatprep.mubr.bf16.mxu0 %v571
    %927 = vmatmul.mubr.bf16.gmra.mrb[0].mxu0 %v570
    %v928 = vpop.f32.mrb[0].mxu0
    %v929 = vadd.f32 %v577, %v928
    %v930 = vpop.f32.mrb[0].mxu0
    %v931 = vadd.f32 %v581, %v930
    %v932 = vpop.f32.mrb[0].mxu0
    %v933 = vadd.f32 %v577, %v932
    %v934 = vpop.f32.mrb[0].mxu0
    %v935 = vadd.f32 %v581, %v934
    %936 = vdwg.mxu0
    %937 = vmatprep.subr.bf16.mxu0 %v761
    %938 = vmatpush1.bf16.msra.mxu0 %v760
    %939 = vmatprep.subr.bf16.mxu0 %v763
    %940 = vmatpush1.bf16.msra.mxu0 %v762
    %941 = vmatprep.subr.bf16.mxu0 %v765
    %942 = vmatpush1.bf16.msra.mxu0 %v764
    %943 = vmatprep.subr.bf16.mxu0 %v767
    %944 = vmatpush1.bf16.msra.mxu0 %v766
    %945 = vmatprep.subr.bf16.mxu0 %v769
    %946 = vmatpush1.bf16.msra.mxu0 %v768
    %947 = vmatprep.subr.bf16.mxu0 %v771
    %948 = vmatpush1.bf16.msra.mxu0 %v770
    %949 = vmatprep.subr.bf16.mxu0 %v773
    %950 = vmatpush1.bf16.msra.mxu0 %v772
    %951 = vmatprep.subr.bf16.mxu0 %v775
    %952 = vmatpush1.bf16.msra.mxu0 %v774
    %953 = vmatprep.subr.bf16.mxu0 0
    %954 = vmatpush1.bf16.msra.mxu0 0
    %955 = vmatprep.subr.bf16.mxu0 0
    %956 = vmatpush1.bf16.msra.mxu0 0
    %957 = vmatprep.subr.bf16.mxu0 0
    %958 = vmatpush1.bf16.msra.mxu0 0
    %959 = vmatprep.subr.bf16.mxu0 0
    %960 = vmatpush1.bf16.msra.mxu0 0
    %961 = vmatprep.subr.bf16.mxu0 0
    %962 = vmatpush1.bf16.msra.mxu0 0
    %963 = vmatprep.subr.bf16.mxu0 0
    %964 = vmatpush1.bf16.msra.mxu0 0
    %965 = vmatprep.subr.bf16.mxu0 0
    %966 = vmatpush1.bf16.msra.mxu0 0
    %967 = vmatprep.subr.bf16.mxu0 0
    %968 = vmatpush1.bf16.msra.mxu0 0
    %969 = vmatprep.mubr.bf16.mxu0 0
    %970 = vmatmul.mubr.bf16.gmra.mrb[0].mxu0 %v551
    %v971 = vpop.f32.mrb[0].mxu0
    %v972 = vadd.f32 %v859, %v971
    %v973 = vpop.f32.mrb[0].mxu0
    %v974 = vadd.f32 %v861, %v973
    %v975 = vpop.f32.mrb[0].mxu0
    %v976 = vadd.f32 %v863, %v975
    %v977 = vpop.f32.mrb[0].mxu0
    %v978 = vadd.f32 %v865, %v977
    %979 = vmatprep.mubr.bf16.mxu0 0
    %980 = vmatmul.mubr.bf16.gmra.mrb[0].mxu0 %v554
    %v981 = vpop.f32.mrb[0].mxu0
    %v982 = vadd.f32 %v869, %v981
    %v983 = vpop.f32.mrb[0].mxu0
    %v984 = vadd.f32 %v871, %v983
    %v985 = vpop.f32.mrb[0].mxu0
    %v986 = vadd.f32 %v873, %v985
    %v987 = vpop.f32.mrb[0].mxu0
    %v988 = vadd.f32 %v875, %v987
    %989 = vmatprep.mubr.bf16.mxu0 0
    %990 = vmatmul.mubr.bf16.gmra.mrb[0].mxu0 %v557
    %v991 = vpop.f32.mrb[0].mxu0
    %v992 = vadd.f32 %v879, %v991
    %v993 = vpop.f32.mrb[0].mxu0
    %v994 = vadd.f32 %v881, %v993
    %v995 = vpop.f32.mrb[0].mxu0
    %v996 = vadd.f32 %v883, %v995
    %v997 = vpop.f32.mrb[0].mxu0
    %v998 = vadd.f32 %v885, %v997
    %999 = vmatprep.mubr.bf16.mxu0 0
    %1000 = vmatmul.mubr.bf16.gmra.mrb[0].mxu0 %v560
    %v1001 = vpop.f32.mrb[0].mxu0
    %v1002 = vadd.f32 %v889, %v1001
    %v1003 = vpop.f32.mrb[0].mxu0
    %v1004 = vadd.f32 %v891, %v1003
    %v1005 = vpop.f32.mrb[0].mxu0
    %v1006 = vadd.f32 %v893, %v1005
    %v1007 = vpop.f32.mrb[0].mxu0
    %v1008 = vadd.f32 %v895, %v1007
    %1009 = vmatprep.mubr.bf16.mxu0 0
    %1010 = vmatmul.mubr.bf16.gmra.mrb[0].mxu0 %v563
    %v1011 = vpop.f32.mrb[0].mxu0
    %v1012 = vadd.f32 %v899, %v1011
    %v1013 = vpop.f32.mrb[0].mxu0
    %v1014 = vadd.f32 %v901, %v1013
    %v1015 = vpop.f32.mrb[0].mxu0
    %v1016 = vadd.f32 %v903, %v1015
    %v1017 = vpop.f32.mrb[0].mxu0
    %v1018 = vadd.f32 %v905, %v1017
    %1019 = vmatprep.mubr.bf16.mxu0 0
    %1020 = vmatmul.mubr.bf16.gmra.mrb[0].mxu0 %v566
    %v1021 = vpop.f32.mrb[0].mxu0
    %v1022 = vadd.f32 %v909, %v1021
    %v1023 = vpop.f32.mrb[0].mxu0
    %v1024 = vadd.f32 %v911, %v1023
    %v1025 = vpop.f32.mrb[0].mxu0
    %v1026 = vadd.f32 %v913, %v1025
    %v1027 = vpop.f32.mrb[0].mxu0
    %v1028 = vadd.f32 %v915, %v1027
    %1029 = vmatprep.mubr.bf16.mxu0 0
    %1030 = vmatmul.mubr.bf16.gmra.mrb[0].mxu0 %v569
    %v1031 = vpop.f32.mrb[0].mxu0
    %v1032 = vadd.f32 %v919, %v1031
    %v1033 = vpop.f32.mrb[0].mxu0
    %v1034 = vadd.f32 %v921, %v1033
    %v1035 = vpop.f32.mrb[0].mxu0
    %v1036 = vadd.f32 %v923, %v1035
    %v1037 = vpop.f32.mrb[0].mxu0
    %v1038 = vadd.f32 %v925, %v1037
    %1039 = vmatprep.mubr.bf16.mxu0 0
    %1040 = vmatmul.mubr.bf16.gmra.mrb[0].mxu0 %v572
    %v1041 = vpop.f32.mrb[0].mxu0
    %v1042 = vadd.f32 %v929, %v1041
    %v1043 = vpop.f32.mrb[0].mxu0
    %v1044 = vadd.f32 %v931, %v1043
    %v1045 = vpop.f32.mrb[0].mxu0
    %v1046 = vadd.f32 %v933, %v1045
    %v1047 = vpop.f32.mrb[0].mxu0
    %v1048 = vadd.f32 %v935, %v1047
    %1049 = vdwg.mxu0
    %v1050 = vmax.f32 %v972, 0.0
    %v1051 = vmax.f32 %v974, 0.0
    %v1052 = vmax.f32 %v976, 0.0
    %v1053 = vmax.f32 %v978, 0.0
    %v1054 = vmax.f32 %v982, 0.0
    %v1055 = vmax.f32 %v984, 0.0
    %v1056 = vmax.f32 %v986, 0.0
    %v1057 = vmax.f32 %v988, 0.0
    %v1058 = vmax.f32 %v992, 0.0
    %v1059 = vmax.f32 %v994, 0.0
    %v1060 = vmax.f32 %v996, 0.0
    %v1061 = vmax.f32 %v998, 0.0
    %v1062 = vmax.f32 %v1002, 0.0
    %v1063 = vmax.f32 %v1004, 0.0
    %v1064 = vmax.f32 %v1006, 0.0
    %v1065 = vmax.f32 %v1008, 0.0
    %v1066 = vmax.f32 %v1012, 0.0
    %v1067 = vmax.f32 %v1014, 0.0
    %v1068 = vmax.f32 %v1016, 0.0
    %v1069 = vmax.f32 %v1018, 0.0
    %v1070 = vmax.f32 %v1022, 0.0
    %v1071 = vmax.f32 %v1024, 0.0
    %v1072 = vmax.f32 %v1026, 0.0
    %v1073 = vmax.f32 %v1028, 0.0
    %v1074 = vmax.f32 %v1032, 0.0
    %v1075 = vmax.f32 %v1034, 0.0
    %v1076 = vmax.f32 %v1036, 0.0
    %v1077 = vmax.f32 %v1038, 0.0
    %v1078 = vmax.f32 %v1042, 0.0
    %v1079 = vmax.f32 %v1044, 0.0
    %v1080 = vmax.f32 %v1046, 0.0
    %v1081 = vmax.f32 %v1048, 0.0
    %v1082 = vld [vmem:[#allocation2 + $0x300] sm:$0xff]
    %v1083 = vld [vmem:[#allocation2 + $0x30c] sm:$0xff]
    %v1084 = vld [vmem:[#allocation2 + $0x318] sm:$0xff]
    %v1085 = vld [vmem:[#allocation2 + $0x324] sm:$0xff]
    %v1086 = vld [vmem:[#allocation2 + $0x330] sm:$0xff]
    %v1087 = vld [vmem:[#allocation2 + $0x33c] sm:$0xff]
    %v1088 = vld [vmem:[#allocation2 + $0x348] sm:$0xff]
    %v1089 = vld [vmem:[#allocation2 + $0x354] sm:$0xff]
    %v1090 = vld [vmem:[#allocation2 + $0x360] sm:$0xff]
    %v1091 = vld [vmem:[#allocation2 + $0x36c] sm:$0xff]
    %v1092 = vld [vmem:[#allocation2 + $0x378] sm:$0xff]
    %v1093 = vld [vmem:[#allocation2 + $0x384] sm:$0xff]
    %v1094 = vld [vmem:[#allocation2 + $0x390] sm:$0xff]
    %v1095 = vld [vmem:[#allocation2 + $0x39c] sm:$0xff]
    %v1096 = vld [vmem:[#allocation2 + $0x3a8] sm:$0xff]
    %v1097 = vld [vmem:[#allocation2 + $0x3b4] sm:$0xff]
    %v1098 = vld [vmem:[#allocation2 + $0x3c0] sm:$0xff]
    %v1099 = vld [vmem:[#allocation2 + $0x3cc] sm:$0xff]
    %v1100 = vld [vmem:[#allocation2 + $0x3d8] sm:$0xff]
    %v1101 = vld [vmem:[#allocation2 + $0x3e4] sm:$0xff]
    %v1102 = vld [vmem:[#allocation2 + $0x3f0] sm:$0xff]
    %v1103 = vld [vmem:[#allocation2 + $0x3fc] sm:$0xff]
    %v1104 = vld [vmem:[#allocation2 + $0x408] sm:$0xff]
    %v1105 = vld [vmem:[#allocation2 + $0x414] sm:$0xff]
    %v1106 = vld [vmem:[#allocation2 + $0x420] sm:$0xff]
    %v1107 = vld [vmem:[#allocation2 + $0x42c] sm:$0xff]
    %v1108 = vld [vmem:[#allocation2 + $0x438] sm:$0xff]
    %v1109 = vld [vmem:[#allocation2 + $0x444] sm:$0xff]
    %v1110 = vld [vmem:[#allocation2 + $0x450] sm:$0xff]
    %v1111 = vld [vmem:[#allocation2 + $0x45c] sm:$0xff]
    %v1112 = vld [vmem:[#allocation2 + $0x468] sm:$0xff]
    %v1113 = vld [vmem:[#allocation2 + $0x474] sm:$0xff]
    %v1114 = vld [vmem:[#allocation4 + $0x5] sm:$0x3]
    %v1115 = vpack.c.bf16 %v1052, %v1050
    %v1116 = vpack.c.bf16 %v1053, %v1051
    %v1117 = vpack.c.bf16 %v1056, %v1054
    %v1118 = vpack.c.bf16 %v1057, %v1055
    %v1119 = vpack.c.bf16 %v1060, %v1058
    %v1120 = vpack.c.bf16 %v1061, %v1059
    %v1121 = vpack.c.bf16 %v1064, %v1062
    %v1122 = vpack.c.bf16 %v1065, %v1063
    %v1123 = vpack.c.bf16 %v1068, %v1066
    %v1124 = vpack.c.bf16 %v1069, %v1067
    %v1125 = vpack.c.bf16 %v1072, %v1070
    %v1126 = vpack.c.bf16 %v1073, %v1071
    %v1127 = vpack.c.bf16 %v1076, %v1074
    %v1128 = vpack.c.bf16 %v1077, %v1075
    %v1129 = vpack.c.bf16 %v1080, %v1078
    %v1130 = vpack.c.bf16 %v1081, %v1079
    %v1132 = vlaneseq
    %v1133 = vshrl.u32 %v1132, 7
    %v1134 = vsub.s32 0, %v1133
    %v1135 = vrot.slane %v1114, %v1134
    %v1136 = vlaneseq
    %v1137 = vshrl.u32 %v1136, 7
    %v1138 = vsub.s32 1, %v1137
    %v1139 = vrot.slane %v1114, %v1138
    %v1174 = vunpack.c.l.b16 %v1082
    %v1175 = vunpack.c.h.b16 %v1082
    %v1176 = vunpack.c.l.b16 %v1083
    %v1177 = vunpack.c.h.b16 %v1083
    %v1178 = vunpack.c.l.b16 %v1084
    %v1179 = vunpack.c.h.b16 %v1084
    %v1180 = vunpack.c.l.b16 %v1085
    %v1181 = vunpack.c.h.b16 %v1085
    %v1182 = vunpack.c.l.b16 %v1086
    %v1183 = vunpack.c.h.b16 %v1086
    %v1184 = vunpack.c.l.b16 %v1087
    %v1185 = vunpack.c.h.b16 %v1087
    %v1186 = vunpack.c.l.b16 %v1088
    %v1187 = vunpack.c.h.b16 %v1088
    %v1188 = vunpack.c.l.b16 %v1089
    %v1189 = vunpack.c.h.b16 %v1089
    %v1190 = vunpack.c.l.b16 %v1090
    %v1191 = vunpack.c.h.b16 %v1090
    %v1192 = vunpack.c.l.b16 %v1091
    %v1193 = vunpack.c.h.b16 %v1091
    %v1194 = vunpack.c.l.b16 %v1092
    %v1195 = vunpack.c.h.b16 %v1092
    %v1196 = vunpack.c.l.b16 %v1093
    %v1197 = vunpack.c.h.b16 %v1093
    %v1198 = vunpack.c.l.b16 %v1094
    %v1199 = vunpack.c.h.b16 %v1094
    %v1200 = vunpack.c.l.b16 %v1095
    %v1201 = vunpack.c.h.b16 %v1095
    %v1202 = vunpack.c.l.b16 %v1096
    %v1203 = vunpack.c.h.b16 %v1096
    %v1204 = vunpack.c.l.b16 %v1097
    %v1205 = vunpack.c.h.b16 %v1097
    %v1206 = vunpack.c.l.b16 %v1098
    %v1207 = vunpack.c.h.b16 %v1098
    %v1208 = vunpack.c.l.b16 %v1099
    %v1209 = vunpack.c.h.b16 %v1099
    %v1210 = vunpack.c.l.b16 %v1100
    %v1211 = vunpack.c.h.b16 %v1100
    %v1212 = vunpack.c.l.b16 %v1101
    %v1213 = vunpack.c.h.b16 %v1101
    %v1214 = vunpack.c.l.b16 %v1102
    %v1215 = vunpack.c.h.b16 %v1102
    %v1216 = vunpack.c.l.b16 %v1103
    %v1217 = vunpack.c.h.b16 %v1103
    %v1218 = vunpack.c.l.b16 %v1104
    %v1219 = vunpack.c.h.b16 %v1104
    %v1220 = vunpack.c.l.b16 %v1105
    %v1221 = vunpack.c.h.b16 %v1105
    %v1222 = vunpack.c.l.b16 %v1106
    %v1223 = vunpack.c.h.b16 %v1106
    %v1224 = vunpack.c.l.b16 %v1107
    %v1225 = vunpack.c.h.b16 %v1107
    %v1226 = vunpack.c.l.b16 %v1108
    %v1227 = vunpack.c.h.b16 %v1108
    %v1228 = vunpack.c.l.b16 %v1109
    %v1229 = vunpack.c.h.b16 %v1109
    %v1230 = vunpack.c.l.b16 %v1110
    %v1231 = vunpack.c.h.b16 %v1110
    %v1232 = vunpack.c.l.b16 %v1111
    %v1233 = vunpack.c.h.b16 %v1111
    %v1234 = vunpack.c.l.b16 %v1112
    %v1235 = vunpack.c.h.b16 %v1112
    %v1236 = vunpack.c.l.b16 %v1113
    %v1237 = vunpack.c.h.b16 %v1113
    %v1238 = vpack.c.b16 %v1176, %v1174
    %v1239 = vpack.c.b16 %v1177, %v1175
    %v1240 = vpack.c.b16 %v1180, %v1178
    %v1241 = vpack.c.b16 %v1181, %v1179
    %v1242 = vpack.c.b16 %v1184, %v1182
    %v1243 = vpack.c.b16 %v1185, %v1183
    %v1244 = vpack.c.b16 %v1188, %v1186
    %v1245 = vpack.c.b16 %v1189, %v1187
    %v1246 = vpack.c.b16 %v1192, %v1190
    %v1247 = vpack.c.b16 %v1193, %v1191
    %v1248 = vpack.c.b16 %v1196, %v1194
    %v1249 = vpack.c.b16 %v1197, %v1195
    %v1250 = vpack.c.b16 %v1200, %v1198
    %v1251 = vpack.c.b16 %v1201, %v1199
    %v1252 = vpack.c.b16 %v1204, %v1202
    %v1253 = vpack.c.b16 %v1205, %v1203
    %v1254 = vpack.c.b16 %v1208, %v1206
    %v1255 = vpack.c.b16 %v1209, %v1207
    %v1256 = vpack.c.b16 %v1212, %v1210
    %v1257 = vpack.c.b16 %v1213, %v1211
    %v1258 = vpack.c.b16 %v1216, %v1214
    %v1259 = vpack.c.b16 %v1217, %v1215
    %v1260 = vpack.c.b16 %v1220, %v1218
    %v1261 = vpack.c.b16 %v1221, %v1219
    %v1262 = vpack.c.b16 %v1224, %v1222
    %v1263 = vpack.c.b16 %v1225, %v1223
    %v1264 = vpack.c.b16 %v1228, %v1226
    %v1265 = vpack.c.b16 %v1229, %v1227
    %v1266 = vpack.c.b16 %v1232, %v1230
    %v1267 = vpack.c.b16 %v1233, %v1231
    %v1268 = vpack.c.b16 %v1236, %v1234
    %v1269 = vpack.c.b16 %v1237, %v1235
    %1302 = vmatprep.subr.bf16.mxu0 %v1239
    %1303 = vmatpush1.bf16.msra.mxu0 %v1238
    %1304 = vmatprep.subr.bf16.mxu0 %v1241
    %1305 = vmatpush1.bf16.msra.mxu0 %v1240
    %1306 = vmatprep.subr.bf16.mxu0 %v1243
    %1307 = vmatpush1.bf16.msra.mxu0 %v1242
    %1308 = vmatprep.subr.bf16.mxu0 %v1245
    %1309 = vmatpush1.bf16.msra.mxu0 %v1244
    %1310 = vmatprep.subr.bf16.mxu0 %v1247
    %1311 = vmatpush1.bf16.msra.mxu0 %v1246
    %1312 = vmatprep.subr.bf16.mxu0 %v1249
    %1313 = vmatpush1.bf16.msra.mxu0 %v1248
    %1314 = vmatprep.subr.bf16.mxu0 %v1251
    %1315 = vmatpush1.bf16.msra.mxu0 %v1250
    %1316 = vmatprep.subr.bf16.mxu0 %v1253
    %1317 = vmatpush1.bf16.msra.mxu0 %v1252
    %1318 = vmatprep.subr.bf16.mxu0 %v1255
    %1319 = vmatpush1.bf16.msra.mxu0 %v1254
    %1320 = vmatprep.subr.bf16.mxu0 %v1257
    %1321 = vmatpush1.bf16.msra.mxu0 %v1256
    %1322 = vmatprep.subr.bf16.mxu0 %v1259
    %1323 = vmatpush1.bf16.msra.mxu0 %v1258
    %1324 = vmatprep.subr.bf16.mxu0 %v1261
    %1325 = vmatpush1.bf16.msra.mxu0 %v1260
    %1326 = vmatprep.subr.bf16.mxu0 %v1263
    %1327 = vmatpush1.bf16.msra.mxu0 %v1262
    %1328 = vmatprep.subr.bf16.mxu0 %v1265
    %1329 = vmatpush1.bf16.msra.mxu0 %v1264
    %1330 = vmatprep.subr.bf16.mxu0 %v1267
    %1331 = vmatpush1.bf16.msra.mxu0 %v1266
    %1332 = vmatprep.subr.bf16.mxu0 %v1269
    %1333 = vmatpush1.bf16.msra.mxu0 %v1268
    %1334 = vmatprep.mubr.bf16.mxu0 %v1116
    %1335 = vmatmul.mubr.bf16.gmra.mrb[0].mxu0 %v1115
    %v1336 = vpop.f32.mrb[0].mxu0
    %v1337 = vadd.f32 %v1135, %v1336
    %v1338 = vpop.f32.mrb[0].mxu0
    %v1339 = vadd.f32 %v1139, %v1338
    %v1340 = vpop.f32.mrb[0].mxu0
    %v1341 = vadd.f32 %v1135, %v1340
    %v1342 = vpop.f32.mrb[0].mxu0
    %v1343 = vadd.f32 %v1139, %v1342
    %1344 = vmatprep.mubr.bf16.mxu0 %v1118
    %1345 = vmatmul.mubr.bf16.gmra.mrb[0].mxu0 %v1117
    %v1346 = vpop.f32.mrb[0].mxu0
    %v1347 = vadd.f32 %v1135, %v1346
    %v1348 = vpop.f32.mrb[0].mxu0
    %v1349 = vadd.f32 %v1139, %v1348
    %v1350 = vpop.f32.mrb[0].mxu0
    %v1351 = vadd.f32 %v1135, %v1350
    %v1352 = vpop.f32.mrb[0].mxu0
    %v1353 = vadd.f32 %v1139, %v1352
    %1354 = vmatprep.mubr.bf16.mxu0 %v1120
    %1355 = vmatmul.mubr.bf16.gmra.mrb[0].mxu0 %v1119
    %v1356 = vpop.f32.mrb[0].mxu0
    %v1357 = vadd.f32 %v1135, %v1356
    %v1358 = vpop.f32.mrb[0].mxu0
    %v1359 = vadd.f32 %v1139, %v1358
    %v1360 = vpop.f32.mrb[0].mxu0
    %v1361 = vadd.f32 %v1135, %v1360
    %v1362 = vpop.f32.mrb[0].mxu0
    %v1363 = vadd.f32 %v1139, %v1362
    %1364 = vmatprep.mubr.bf16.mxu0 %v1122
    %1365 = vmatmul.mubr.bf16.gmra.mrb[0].mxu0 %v1121
    %v1366 = vpop.f32.mrb[0].mxu0
    %v1367 = vadd.f32 %v1135, %v1366
    %v1368 = vpop.f32.mrb[0].mxu0
    %v1369 = vadd.f32 %v1139, %v1368
    %v1370 = vpop.f32.mrb[0].mxu0
    %v1371 = vadd.f32 %v1135, %v1370
    %v1372 = vpop.f32.mrb[0].mxu0
    %v1373 = vadd.f32 %v1139, %v1372
    %1374 = vmatprep.mubr.bf16.mxu0 %v1124
    %1375 = vmatmul.mubr.bf16.gmra.mrb[0].mxu0 %v1123
    %v1376 = vpop.f32.mrb[0].mxu0
    %v1377 = vadd.f32 %v1135, %v1376
    %v1378 = vpop.f32.mrb[0].mxu0
    %v1379 = vadd.f32 %v1139, %v1378
    %v1380 = vpop.f32.mrb[0].mxu0
    %v1381 = vadd.f32 %v1135, %v1380
    %v1382 = vpop.f32.mrb[0].mxu0
    %v1383 = vadd.f32 %v1139, %v1382
    %1384 = vmatprep.mubr.bf16.mxu0 %v1126
    %1385 = vmatmul.mubr.bf16.gmra.mrb[0].mxu0 %v1125
    %v1386 = vpop.f32.mrb[0].mxu0
    %v1387 = vadd.f32 %v1135, %v1386
    %v1388 = vpop.f32.mrb[0].mxu0
    %v1389 = vadd.f32 %v1139, %v1388
    %v1390 = vpop.f32.mrb[0].mxu0
    %v1391 = vadd.f32 %v1135, %v1390
    %v1392 = vpop.f32.mrb[0].mxu0
    %v1393 = vadd.f32 %v1139, %v1392
    %1394 = vmatprep.mubr.bf16.mxu0 %v1128
    %1395 = vmatmul.mubr.bf16.gmra.mrb[0].mxu0 %v1127
    %v1396 = vpop.f32.mrb[0].mxu0
    %v1397 = vadd.f32 %v1135, %v1396
    %v1398 = vpop.f32.mrb[0].mxu0
    %v1399 = vadd.f32 %v1139, %v1398
    %v1400 = vpop.f32.mrb[0].mxu0
    %v1401 = vadd.f32 %v1135, %v1400
    %v1402 = vpop.f32.mrb[0].mxu0
    %v1403 = vadd.f32 %v1139, %v1402
    %1404 = vmatprep.mubr.bf16.mxu0 %v1130
    %1405 = vmatmul.mubr.bf16.gmra.mrb[0].mxu0 %v1129
    %v1406 = vpop.f32.mrb[0].mxu0
    %v1407 = vadd.f32 %v1135, %v1406
    %v1408 = vpop.f32.mrb[0].mxu0
    %v1409 = vadd.f32 %v1139, %v1408
    %v1410 = vpop.f32.mrb[0].mxu0
    %v1411 = vadd.f32 %v1135, %v1410
    %v1412 = vpop.f32.mrb[0].mxu0
    %v1413 = vadd.f32 %v1139, %v1412
    %1414 = vdwg.mxu0
    %v1415 = vmax.f32 %v1337, 0.0
    %v1416 = vmax.f32 %v1339, 0.0
    %v1417 = vmax.f32 %v1341, 0.0
    %v1418 = vmax.f32 %v1343, 0.0
    %v1419 = vmax.f32 %v1347, 0.0
    %v1420 = vmax.f32 %v1349, 0.0
    %v1421 = vmax.f32 %v1351, 0.0
    %v1422 = vmax.f32 %v1353, 0.0
    %v1423 = vmax.f32 %v1357, 0.0
    %v1424 = vmax.f32 %v1359, 0.0
    %v1425 = vmax.f32 %v1361, 0.0
    %v1426 = vmax.f32 %v1363, 0.0
    %v1427 = vmax.f32 %v1367, 0.0
    %v1428 = vmax.f32 %v1369, 0.0
    %v1429 = vmax.f32 %v1371, 0.0
    %v1430 = vmax.f32 %v1373, 0.0
    %v1431 = vmax.f32 %v1377, 0.0
    %v1432 = vmax.f32 %v1379, 0.0
    %v1433 = vmax.f32 %v1381, 0.0
    %v1434 = vmax.f32 %v1383, 0.0
    %v1435 = vmax.f32 %v1387, 0.0
    %v1436 = vmax.f32 %v1389, 0.0
    %v1437 = vmax.f32 %v1391, 0.0
    %v1438 = vmax.f32 %v1393, 0.0
    %v1439 = vmax.f32 %v1397, 0.0
    %v1440 = vmax.f32 %v1399, 0.0
    %v1441 = vmax.f32 %v1401, 0.0
    %v1442 = vmax.f32 %v1403, 0.0
    %v1443 = vmax.f32 %v1407, 0.0
    %v1444 = vmax.f32 %v1409, 0.0
    %v1445 = vmax.f32 %v1411, 0.0
    %v1446 = vmax.f32 %v1413, 0.0
    %v1447 = vld [vmem:[#allocation2 + $0x480] sm:$0xf]
    %v1448 = vld [vmem:[#allocation2 + $0x48c] sm:$0xf]
    %v1449 = vld [vmem:[#allocation2 + $0x498] sm:$0xf]
    %v1450 = vld [vmem:[#allocation2 + $0x4a4] sm:$0xf]
    %v1451 = vld [vmem:[#allocation2 + $0x4b0] sm:$0xf]
    %v1452 = vld [vmem:[#allocation2 + $0x4bc] sm:$0xf]
    %v1453 = vld [vmem:[#allocation2 + $0x4c8] sm:$0xf]
    %v1454 = vld [vmem:[#allocation2 + $0x4d4] sm:$0xf]
    %v1455 = vld [vmem:[#allocation2 + $0x4e0] sm:$0xf]
    %v1456 = vld [vmem:[#allocation2 + $0x4ec] sm:$0xf]
    %v1457 = vld [vmem:[#allocation2 + $0x4f8] sm:$0xf]
    %v1458 = vld [vmem:[#allocation2 + $0x504] sm:$0xf]
    %v1459 = vld [vmem:[#allocation2 + $0x510] sm:$0xf]
    %v1460 = vld [vmem:[#allocation2 + $0x51c] sm:$0xf]
    %v1461 = vld [vmem:[#allocation2 + $0x528] sm:$0xf]
    %v1462 = vld [vmem:[#allocation2 + $0x534] sm:$0xf]
    %v1463 = vld [vmem:[#allocation2 + $0x540] sm:$0xf]
    %v1464 = vld [vmem:[#allocation2 + $0x54c] sm:$0xf]
    %v1465 = vld [vmem:[#allocation2 + $0x558] sm:$0xf]
    %v1466 = vld [vmem:[#allocation2 + $0x564] sm:$0xf]
    %v1467 = vld [vmem:[#allocation2 + $0x570] sm:$0xf]
    %v1468 = vld [vmem:[#allocation2 + $0x57c] sm:$0xf]
    %v1469 = vld [vmem:[#allocation2 + $0x588] sm:$0xf]
    %v1470 = vld [vmem:[#allocation2 + $0x594] sm:$0xf]
    %v1471 = vld [vmem:[#allocation2 + $0x5a0] sm:$0xf]
    %v1472 = vld [vmem:[#allocation2 + $0x5ac] sm:$0xf]
    %v1473 = vld [vmem:[#allocation2 + $0x5b8] sm:$0xf]
    %v1474 = vld [vmem:[#allocation2 + $0x5c4] sm:$0xf]
    %v1475 = vld [vmem:[#allocation2 + $0x5d0] sm:$0xf]
    %v1476 = vld [vmem:[#allocation2 + $0x5dc] sm:$0xf]
    %v1477 = vld [vmem:[#allocation2 + $0x5e8] sm:$0xf]
    %v1478 = vld [vmem:[#allocation2 + $0x5f4] sm:$0xf]
    %v1479 = vld [vmem:[#allocation4 + $0x7] sm:$0x1]
    %v1480 = vpack.c.bf16 %v1417, %v1415
    %v1481 = vpack.c.bf16 %v1418, %v1416
    %v1482 = vpack.c.bf16 %v1421, %v1419
    %v1483 = vpack.c.bf16 %v1422, %v1420
    %v1484 = vpack.c.bf16 %v1425, %v1423
    %v1485 = vpack.c.bf16 %v1426, %v1424
    %v1486 = vpack.c.bf16 %v1429, %v1427
    %v1487 = vpack.c.bf16 %v1430, %v1428
    %v1488 = vpack.c.bf16 %v1433, %v1431
    %v1489 = vpack.c.bf16 %v1434, %v1432
    %v1490 = vpack.c.bf16 %v1437, %v1435
    %v1491 = vpack.c.bf16 %v1438, %v1436
    %v1492 = vpack.c.bf16 %v1441, %v1439
    %v1493 = vpack.c.bf16 %v1442, %v1440
    %v1494 = vpack.c.bf16 %v1445, %v1443
    %v1495 = vpack.c.bf16 %v1446, %v1444
    %v1497 = vlaneseq
    %v1498 = vshrl.u32 %v1497, 7
    %v1499 = vsub.s32 0, %v1498
    %v1500 = vrot.slane %v1479, %v1499
    %v1534 = vunpack.c.l.b16 %v1447
    %v1535 = vunpack.c.l.b16 %v1448
    %v1536 = vunpack.c.l.b16 %v1449
    %v1537 = vunpack.c.l.b16 %v1450
    %v1538 = vunpack.c.l.b16 %v1451
    %v1539 = vunpack.c.l.b16 %v1452
    %v1540 = vunpack.c.l.b16 %v1453
    %v1541 = vunpack.c.l.b16 %v1454
    %v1542 = vunpack.c.l.b16 %v1455
    %v1543 = vunpack.c.l.b16 %v1456
    %v1544 = vunpack.c.l.b16 %v1457
    %v1545 = vunpack.c.l.b16 %v1458
    %v1546 = vunpack.c.l.b16 %v1459
    %v1547 = vunpack.c.l.b16 %v1460
    %v1548 = vunpack.c.l.b16 %v1461
    %v1549 = vunpack.c.l.b16 %v1462
    %v1550 = vunpack.c.l.b16 %v1463
    %v1551 = vunpack.c.l.b16 %v1464
    %v1552 = vunpack.c.l.b16 %v1465
    %v1553 = vunpack.c.l.b16 %v1466
    %v1554 = vunpack.c.l.b16 %v1467
    %v1555 = vunpack.c.l.b16 %v1468
    %v1556 = vunpack.c.l.b16 %v1469
    %v1557 = vunpack.c.l.b16 %v1470
    %v1558 = vunpack.c.l.b16 %v1471
    %v1559 = vunpack.c.l.b16 %v1472
    %v1560 = vunpack.c.l.b16 %v1473
    %v1561 = vunpack.c.l.b16 %v1474
    %v1562 = vunpack.c.l.b16 %v1475
    %v1563 = vunpack.c.l.b16 %v1476
    %v1564 = vunpack.c.l.b16 %v1477
    %v1565 = vunpack.c.l.b16 %v1478
    %v1566 = vpack.c.b16 %v1535, %v1534
    %v1567 = vpack.c.b16 %v1537, %v1536
    %v1568 = vpack.c.b16 %v1539, %v1538
    %v1569 = vpack.c.b16 %v1541, %v1540
    %v1570 = vpack.c.b16 %v1543, %v1542
    %v1571 = vpack.c.b16 %v1545, %v1544
    %v1572 = vpack.c.b16 %v1547, %v1546
    %v1573 = vpack.c.b16 %v1549, %v1548
    %v1574 = vpack.c.b16 %v1551, %v1550
    %v1575 = vpack.c.b16 %v1553, %v1552
    %v1576 = vpack.c.b16 %v1555, %v1554
    %v1577 = vpack.c.b16 %v1557, %v1556
    %v1578 = vpack.c.b16 %v1559, %v1558
    %v1579 = vpack.c.b16 %v1561, %v1560
    %v1580 = vpack.c.b16 %v1563, %v1562
    %v1581 = vpack.c.b16 %v1565, %v1564
    %1598 = vmatprep.subr.bf16.mxu0 0
    %1599 = vmatpush1.bf16.msra.mxu0 %v1566
    %1600 = vmatprep.subr.bf16.mxu0 0
    %1601 = vmatpush1.bf16.msra.mxu0 %v1567
    %1602 = vmatprep.subr.bf16.mxu0 0
    %1603 = vmatpush1.bf16.msra.mxu0 %v1568
    %1604 = vmatprep.subr.bf16.mxu0 0
    %1605 = vmatpush1.bf16.msra.mxu0 %v1569
    %1606 = vmatprep.subr.bf16.mxu0 0
    %1607 = vmatpush1.bf16.msra.mxu0 %v1570
    %1608 = vmatprep.subr.bf16.mxu0 0
    %1609 = vmatpush1.bf16.msra.mxu0 %v1571
    %1610 = vmatprep.subr.bf16.mxu0 0
    %1611 = vmatpush1.bf16.msra.mxu0 %v1572
    %1612 = vmatprep.subr.bf16.mxu0 0
    %1613 = vmatpush1.bf16.msra.mxu0 %v1573
    %1614 = vmatprep.subr.bf16.mxu0 0
    %1615 = vmatpush1.bf16.msra.mxu0 %v1574
    %1616 = vmatprep.subr.bf16.mxu0 0
    %1617 = vmatpush1.bf16.msra.mxu0 %v1575
    %1618 = vmatprep.subr.bf16.mxu0 0
    %1619 = vmatpush1.bf16.msra.mxu0 %v1576
    %1620 = vmatprep.subr.bf16.mxu0 0
    %1621 = vmatpush1.bf16.msra.mxu0 %v1577
    %1622 = vmatprep.subr.bf16.mxu0 0
    %1623 = vmatpush1.bf16.msra.mxu0 %v1578
    %1624 = vmatprep.subr.bf16.mxu0 0
    %1625 = vmatpush1.bf16.msra.mxu0 %v1579
    %1626 = vmatprep.subr.bf16.mxu0 0
    %1627 = vmatpush1.bf16.msra.mxu0 %v1580
    %1628 = vmatprep.subr.bf16.mxu0 0
    %1629 = vmatpush1.bf16.msra.mxu0 %v1581
    %1630 = vmatprep.mubr.bf16.mxu0 %v1481
    %1631 = vmatmul.mubr.bf16.gmra.mrb[0].mxu0 %v1480
    %v1632 = vpop.f32.mrb[0].mxu0
    %v1633 = vadd.f32 %v1500, %v1632
    %v1634 = vpop.f32.mrb[0].mxu0
    %v1635 = vpop.f32.mrb[0].mxu0
    %v1636 = vadd.f32 %v1500, %v1635
    %v1637 = vpop.f32.mrb[0].mxu0
    %1638 = vmatprep.mubr.bf16.mxu0 %v1483
    %1639 = vmatmul.mubr.bf16.gmra.mrb[0].mxu0 %v1482
    %v1640 = vpop.f32.mrb[0].mxu0
    %v1641 = vadd.f32 %v1500, %v1640
    %v1642 = vpop.f32.mrb[0].mxu0
    %v1643 = vpop.f32.mrb[0].mxu0
    %v1644 = vadd.f32 %v1500, %v1643
    %v1645 = vpop.f32.mrb[0].mxu0
    %1646 = vmatprep.mubr.bf16.mxu0 %v1485
    %1647 = vmatmul.mubr.bf16.gmra.mrb[0].mxu0 %v1484
    %v1648 = vpop.f32.mrb[0].mxu0
    %v1649 = vadd.f32 %v1500, %v1648
    %v1650 = vpop.f32.mrb[0].mxu0
    %v1651 = vpop.f32.mrb[0].mxu0
    %v1652 = vadd.f32 %v1500, %v1651
    %v1653 = vpop.f32.mrb[0].mxu0
    %1654 = vmatprep.mubr.bf16.mxu0 %v1487
    %1655 = vmatmul.mubr.bf16.gmra.mrb[0].mxu0 %v1486
    %v1656 = vpop.f32.mrb[0].mxu0
    %v1657 = vadd.f32 %v1500, %v1656
    %v1658 = vpop.f32.mrb[0].mxu0
    %v1659 = vpop.f32.mrb[0].mxu0
    %v1660 = vadd.f32 %v1500, %v1659
    %v1661 = vpop.f32.mrb[0].mxu0
    %1662 = vmatprep.mubr.bf16.mxu0 %v1489
    %1663 = vmatmul.mubr.bf16.gmra.mrb[0].mxu0 %v1488
    %v1664 = vpop.f32.mrb[0].mxu0
    %v1665 = vadd.f32 %v1500, %v1664
    %v1666 = vpop.f32.mrb[0].mxu0
    %v1667 = vpop.f32.mrb[0].mxu0
    %v1668 = vadd.f32 %v1500, %v1667
    %v1669 = vpop.f32.mrb[0].mxu0
    %1670 = vmatprep.mubr.bf16.mxu0 %v1491
    %1671 = vmatmul.mubr.bf16.gmra.mrb[0].mxu0 %v1490
    %v1672 = vpop.f32.mrb[0].mxu0
    %v1673 = vadd.f32 %v1500, %v1672
    %v1674 = vpop.f32.mrb[0].mxu0
    %v1675 = vpop.f32.mrb[0].mxu0
    %v1676 = vadd.f32 %v1500, %v1675
    %v1677 = vpop.f32.mrb[0].mxu0
    %1678 = vmatprep.mubr.bf16.mxu0 %v1493
    %1679 = vmatmul.mubr.bf16.gmra.mrb[0].mxu0 %v1492
    %v1680 = vpop.f32.mrb[0].mxu0
    %v1681 = vadd.f32 %v1500, %v1680
    %v1682 = vpop.f32.mrb[0].mxu0
    %v1683 = vpop.f32.mrb[0].mxu0
    %v1684 = vadd.f32 %v1500, %v1683
    %v1685 = vpop.f32.mrb[0].mxu0
    %1686 = vmatprep.mubr.bf16.mxu0 %v1495
    %1687 = vmatmul.mubr.bf16.gmra.mrb[0].mxu0 %v1494
    %v1688 = vpop.f32.mrb[0].mxu0
    %v1689 = vadd.f32 %v1500, %v1688
    %v1690 = vpop.f32.mrb[0].mxu0
    %v1691 = vpop.f32.mrb[0].mxu0
    %v1692 = vadd.f32 %v1500, %v1691
    %v1693 = vpop.f32.mrb[0].mxu0
    %1694 = vdwg.mxu0
    %v1695 = vmax.f32 %v1633, 0.0
    %v1696 = vmax.f32 %v1636, 0.0
    %v1697 = vmax.f32 %v1641, 0.0
    %v1698 = vmax.f32 %v1644, 0.0
    %v1699 = vmax.f32 %v1649, 0.0
    %v1700 = vmax.f32 %v1652, 0.0
    %v1701 = vmax.f32 %v1657, 0.0
    %v1702 = vmax.f32 %v1660, 0.0
    %v1703 = vmax.f32 %v1665, 0.0
    %v1704 = vmax.f32 %v1668, 0.0
    %v1705 = vmax.f32 %v1673, 0.0
    %v1706 = vmax.f32 %v1676, 0.0
    %v1707 = vmax.f32 %v1681, 0.0
    %v1708 = vmax.f32 %v1684, 0.0
    %v1709 = vmax.f32 %v1689, 0.0
    %v1710 = vmax.f32 %v1692, 0.0
    %v1711 = vld [vmem:[#allocation2 + $0x600] sm:$0xf]
    %v1712 = vld [vmem:[#allocation2 + $0x60c] sm:$0xf]
    %v1713 = vld [vmem:[#allocation2 + $0x618] sm:$0xf]
    %v1714 = vld [vmem:[#allocation2 + $0x624] sm:$0xf]
    %v1715 = vld [vmem:[#allocation2 + $0x630] sm:$0xf]
    %v1716 = vld [vmem:[#allocation2 + $0x63c] sm:$0xf]
    %v1717 = vld [vmem:[#allocation2 + $0x648] sm:$0xf]
    %v1718 = vld [vmem:[#allocation2 + $0x654] sm:$0xf]
    %v1719 = vld [vmem:[#allocation2 + $0x660] sm:$0xf]
    %v1720 = vld [vmem:[#allocation2 + $0x66c] sm:$0xf]
    %v1721 = vld [vmem:[#allocation2 + $0x678] sm:$0xf]
    %v1722 = vld [vmem:[#allocation2 + $0x684] sm:$0xf]
    %v1723 = vld [vmem:[#allocation2 + $0x690] sm:$0xf]
    %v1724 = vld [vmem:[#allocation2 + $0x69c] sm:$0xf]
    %v1725 = vld [vmem:[#allocation2 + $0x6a8] sm:$0xf]
    %v1726 = vld [vmem:[#allocation2 + $0x6b4] sm:$0xf]
    %v1727 = vld [vmem:[#allocation4 + $0x8] sm:$0x1]
    %v1728 = vpack.c.bf16 %v1696, %v1695
    %v1729 = vpack.c.bf16 %v1698, %v1697
    %v1730 = vpack.c.bf16 %v1700, %v1699
    %v1731 = vpack.c.bf16 %v1702, %v1701
    %v1732 = vpack.c.bf16 %v1704, %v1703
    %v1733 = vpack.c.bf16 %v1706, %v1705
    %v1734 = vpack.c.bf16 %v1708, %v1707
    %v1735 = vpack.c.bf16 %v1710, %v1709
    %v1737 = vlaneseq
    %v1738 = vshrl.u32 %v1737, 7
    %v1739 = vsub.s32 0, %v1738
    %v1740 = vrot.slane %v1727, %v1739
    %v1758 = vunpack.c.l.b16 %v1711
    %v1759 = vunpack.c.l.b16 %v1712
    %v1760 = vunpack.c.l.b16 %v1713
    %v1761 = vunpack.c.l.b16 %v1714
    %v1762 = vunpack.c.l.b16 %v1715
    %v1763 = vunpack.c.l.b16 %v1716
    %v1764 = vunpack.c.l.b16 %v1717
    %v1765 = vunpack.c.l.b16 %v1718
    %v1766 = vunpack.c.l.b16 %v1719
    %v1767 = vunpack.c.l.b16 %v1720
    %v1768 = vunpack.c.l.b16 %v1721
    %v1769 = vunpack.c.l.b16 %v1722
    %v1770 = vunpack.c.l.b16 %v1723
    %v1771 = vunpack.c.l.b16 %v1724
    %v1772 = vunpack.c.l.b16 %v1725
    %v1773 = vunpack.c.l.b16 %v1726
    %v1774 = vpack.c.b16 %v1759, %v1758
    %v1775 = vpack.c.b16 %v1761, %v1760
    %v1776 = vpack.c.b16 %v1763, %v1762
    %v1777 = vpack.c.b16 %v1765, %v1764
    %v1778 = vpack.c.b16 %v1767, %v1766
    %v1779 = vpack.c.b16 %v1769, %v1768
    %v1780 = vpack.c.b16 %v1771, %v1770
    %v1781 = vpack.c.b16 %v1773, %v1772
    %1790 = vmatprep.subr.bf16.mxu0 0
    %1791 = vmatpush1.bf16.msra.mxu0 %v1774
    %1792 = vmatprep.subr.bf16.mxu0 0
    %1793 = vmatpush1.bf16.msra.mxu0 %v1775
    %1794 = vmatprep.subr.bf16.mxu0 0
    %1795 = vmatpush1.bf16.msra.mxu0 %v1776
    %1796 = vmatprep.subr.bf16.mxu0 0
    %1797 = vmatpush1.bf16.msra.mxu0 %v1777
    %1798 = vmatprep.subr.bf16.mxu0 0
    %1799 = vmatpush1.bf16.msra.mxu0 %v1778
    %1800 = vmatprep.subr.bf16.mxu0 0
    %1801 = vmatpush1.bf16.msra.mxu0 %v1779
    %1802 = vmatprep.subr.bf16.mxu0 0
    %1803 = vmatpush1.bf16.msra.mxu0 %v1780
    %1804 = vmatprep.subr.bf16.mxu0 0
    %1805 = vmatpush1.bf16.msra.mxu0 %v1781
    %1806 = vmatprep.subr.bf16.mxu0 0
    %1807 = vmatpush1.bf16.msra.mxu0 0
    %1808 = vmatprep.subr.bf16.mxu0 0
    %1809 = vmatpush1.bf16.msra.mxu0 0
    %1810 = vmatprep.subr.bf16.mxu0 0
    %1811 = vmatpush1.bf16.msra.mxu0 0
    %1812 = vmatprep.subr.bf16.mxu0 0
    %1813 = vmatpush1.bf16.msra.mxu0 0
    %1814 = vmatprep.subr.bf16.mxu0 0
    %1815 = vmatpush1.bf16.msra.mxu0 0
    %1816 = vmatprep.subr.bf16.mxu0 0
    %1817 = vmatpush1.bf16.msra.mxu0 0
    %1818 = vmatprep.subr.bf16.mxu0 0
    %1819 = vmatpush1.bf16.msra.mxu0 0
    %1820 = vmatprep.subr.bf16.mxu0 0
    %1821 = vmatpush1.bf16.msra.mxu0 0
    %1822 = vmatprep.mubr.bf16.mxu0 0
    %1823 = vmatmul.mubr.bf16.gmra.mrb[0].mxu0 %v1728
    %v1824 = vpop.f32.mrb[0].mxu0
    %v1825 = vadd.f32 %v1740, %v1824
    %v1826 = vpop.f32.mrb[0].mxu0
    %v1827 = vpop.f32.mrb[0].mxu0
    %v1828 = vadd.f32 %v1740, %v1827
    %v1829 = vpop.f32.mrb[0].mxu0
    %1830 = vmatprep.mubr.bf16.mxu0 0
    %1831 = vmatmul.mubr.bf16.gmra.mrb[0].mxu0 %v1729
    %v1832 = vpop.f32.mrb[0].mxu0
    %v1833 = vadd.f32 %v1740, %v1832
    %v1834 = vpop.f32.mrb[0].mxu0
    %v1835 = vpop.f32.mrb[0].mxu0
    %v1836 = vadd.f32 %v1740, %v1835
    %v1837 = vpop.f32.mrb[0].mxu0
    %1838 = vmatprep.mubr.bf16.mxu0 0
    %1839 = vmatmul.mubr.bf16.gmra.mrb[0].mxu0 %v1730
    %v1840 = vpop.f32.mrb[0].mxu0
    %v1841 = vadd.f32 %v1740, %v1840
    %v1842 = vpop.f32.mrb[0].mxu0
    %v1843 = vpop.f32.mrb[0].mxu0
    %v1844 = vadd.f32 %v1740, %v1843
    %v1845 = vpop.f32.mrb[0].mxu0
    %1846 = vmatprep.mubr.bf16.mxu0 0
    %1847 = vmatmul.mubr.bf16.gmra.mrb[0].mxu0 %v1731
    %v1848 = vpop.f32.mrb[0].mxu0
    %v1849 = vadd.f32 %v1740, %v1848
    %v1850 = vpop.f32.mrb[0].mxu0
    %v1851 = vpop.f32.mrb[0].mxu0
    %v1852 = vadd.f32 %v1740, %v1851
    %v1853 = vpop.f32.mrb[0].mxu0
    %1854 = vmatprep.mubr.bf16.mxu0 0
    %1855 = vmatmul.mubr.bf16.gmra.mrb[0].mxu0 %v1732
    %v1856 = vpop.f32.mrb[0].mxu0
    %v1857 = vadd.f32 %v1740, %v1856
    %v1858 = vpop.f32.mrb[0].mxu0
    %v1859 = vpop.f32.mrb[0].mxu0
    %v1860 = vadd.f32 %v1740, %v1859
    %v1861 = vpop.f32.mrb[0].mxu0
    %1862 = vmatprep.mubr.bf16.mxu0 0
    %1863 = vmatmul.mubr.bf16.gmra.mrb[0].mxu0 %v1733
    %v1864 = vpop.f32.mrb[0].mxu0
    %v1865 = vadd.f32 %v1740, %v1864
    %v1866 = vpop.f32.mrb[0].mxu0
    %v1867 = vpop.f32.mrb[0].mxu0
    %v1868 = vadd.f32 %v1740, %v1867
    %v1869 = vpop.f32.mrb[0].mxu0
    %1870 = vmatprep.mubr.bf16.mxu0 0
    %1871 = vmatmul.mubr.bf16.gmra.mrb[0].mxu0 %v1734
    %v1872 = vpop.f32.mrb[0].mxu0
    %v1873 = vadd.f32 %v1740, %v1872
    %v1874 = vpop.f32.mrb[0].mxu0
    %v1875 = vpop.f32.mrb[0].mxu0
    %v1876 = vadd.f32 %v1740, %v1875
    %v1877 = vpop.f32.mrb[0].mxu0
    %1878 = vmatprep.mubr.bf16.mxu0 0
    %1879 = vmatmul.mubr.bf16.gmra.mrb[0].mxu0 %v1735
    %v1880 = vpop.f32.mrb[0].mxu0
    %v1881 = vadd.f32 %v1740, %v1880
    %v1882 = vpop.f32.mrb[0].mxu0
    %v1883 = vpop.f32.mrb[0].mxu0
    %v1884 = vadd.f32 %v1740, %v1883
    %v1885 = vpop.f32.mrb[0].mxu0
    %1886 = vdwg.mxu0
    %v1887 = vmax.f32 %v1825, 0.0
    %v1888 = vmax.f32 %v1828, 0.0
    %v1889 = vmax.f32 %v1833, 0.0
    %v1890 = vmax.f32 %v1836, 0.0
    %v1891 = vmax.f32 %v1841, 0.0
    %v1892 = vmax.f32 %v1844, 0.0
    %v1893 = vmax.f32 %v1849, 0.0
    %v1894 = vmax.f32 %v1852, 0.0
    %v1895 = vmax.f32 %v1857, 0.0
    %v1896 = vmax.f32 %v1860, 0.0
    %v1897 = vmax.f32 %v1865, 0.0
    %v1898 = vmax.f32 %v1868, 0.0
    %v1899 = vmax.f32 %v1873, 0.0
    %v1900 = vmax.f32 %v1876, 0.0
    %v1901 = vmax.f32 %v1881, 0.0
    %v1902 = vmax.f32 %v1884, 0.0
    %v1903 = vld [vmem:[#allocation2 + $0x6c0] sm:$0xf]
    %v1904 = vld [vmem:[#allocation2 + $0x6cc] sm:$0xf]
    %v1905 = vld [vmem:[#allocation2 + $0x6d8] sm:$0xf]
    %v1906 = vld [vmem:[#allocation2 + $0x6e4] sm:$0xf]
    %v1907 = vld [vmem:[#allocation2 + $0x6f0] sm:$0xf]
    %v1908 = vld [vmem:[#allocation2 + $0x6fc] sm:$0xf]
    %v1909 = vld [vmem:[#allocation2 + $0x708] sm:$0xf]
    %v1910 = vld [vmem:[#allocation2 + $0x714] sm:$0xf]
    %v1911 = vld [vmem:[#allocation2 + $0x720] sm:$0xf]
    %v1912 = vld [vmem:[#allocation2 + $0x72c] sm:$0xf]
    %v1913 = vld [vmem:[#allocation2 + $0x738] sm:$0xf]
    %v1914 = vld [vmem:[#allocation2 + $0x744] sm:$0xf]
    %v1915 = vld [vmem:[#allocation2 + $0x750] sm:$0xf]
    %v1916 = vld [vmem:[#allocation2 + $0x75c] sm:$0xf]
    %v1917 = vld [vmem:[#allocation2 + $0x768] sm:$0xf]
    %v1918 = vld [vmem:[#allocation2 + $0x774] sm:$0xf]
    %v1919 = vld [vmem:[#allocation4 + $0x9] sm:$0x1]
    %v1920 = vpack.c.bf16 %v1888, %v1887
    %v1921 = vpack.c.bf16 %v1890, %v1889
    %v1922 = vpack.c.bf16 %v1892, %v1891
    %v1923 = vpack.c.bf16 %v1894, %v1893
    %v1924 = vpack.c.bf16 %v1896, %v1895
    %v1925 = vpack.c.bf16 %v1898, %v1897
    %v1926 = vpack.c.bf16 %v1900, %v1899
    %v1927 = vpack.c.bf16 %v1902, %v1901
    %v1929 = vlaneseq
    %v1930 = vshrl.u32 %v1929, 7
    %v1931 = vsub.s32 0, %v1930
    %v1932 = vrot.slane %v1919, %v1931
    %v1950 = vunpack.c.l.b16 %v1903
    %v1951 = vunpack.c.l.b16 %v1904
    %v1952 = vunpack.c.l.b16 %v1905
    %v1953 = vunpack.c.l.b16 %v1906
    %v1954 = vunpack.c.l.b16 %v1907
    %v1955 = vunpack.c.l.b16 %v1908
    %v1956 = vunpack.c.l.b16 %v1909
    %v1957 = vunpack.c.l.b16 %v1910
    %v1958 = vunpack.c.l.b16 %v1911
    %v1959 = vunpack.c.l.b16 %v1912
    %v1960 = vunpack.c.l.b16 %v1913
    %v1961 = vunpack.c.l.b16 %v1914
    %v1962 = vunpack.c.l.b16 %v1915
    %v1963 = vunpack.c.l.b16 %v1916
    %v1964 = vunpack.c.l.b16 %v1917
    %v1965 = vunpack.c.l.b16 %v1918
    %v1966 = vpack.c.b16 %v1951, %v1950
    %v1967 = vpack.c.b16 %v1953, %v1952
    %v1968 = vpack.c.b16 %v1955, %v1954
    %v1969 = vpack.c.b16 %v1957, %v1956
    %v1970 = vpack.c.b16 %v1959, %v1958
    %v1971 = vpack.c.b16 %v1961, %v1960
    %v1972 = vpack.c.b16 %v1963, %v1962
    %v1973 = vpack.c.b16 %v1965, %v1964
    %1982 = vmatprep.subr.bf16.mxu0 0
    %1983 = vmatpush1.bf16.msra.mxu0 %v1966
    %1984 = vmatprep.subr.bf16.mxu0 0
    %1985 = vmatpush1.bf16.msra.mxu0 %v1967
    %1986 = vmatprep.subr.bf16.mxu0 0
    %1987 = vmatpush1.bf16.msra.mxu0 %v1968
    %1988 = vmatprep.subr.bf16.mxu0 0
    %1989 = vmatpush1.bf16.msra.mxu0 %v1969
    %1990 = vmatprep.subr.bf16.mxu0 0
    %1991 = vmatpush1.bf16.msra.mxu0 %v1970
    %1992 = vmatprep.subr.bf16.mxu0 0
    %1993 = vmatpush1.bf16.msra.mxu0 %v1971
    %1994 = vmatprep.subr.bf16.mxu0 0
    %1995 = vmatpush1.bf16.msra.mxu0 %v1972
    %1996 = vmatprep.subr.bf16.mxu0 0
    %1997 = vmatpush1.bf16.msra.mxu0 %v1973
    %1998 = vmatprep.subr.bf16.mxu0 0
    %1999 = vmatpush1.bf16.msra.mxu0 0
    %2000 = vmatprep.subr.bf16.mxu0 0
    %2001 = vmatpush1.bf16.msra.mxu0 0
    %2002 = vmatprep.subr.bf16.mxu0 0
    %2003 = vmatpush1.bf16.msra.mxu0 0
    %2004 = vmatprep.subr.bf16.mxu0 0
    %2005 = vmatpush1.bf16.msra.mxu0 0
    %2006 = vmatprep.subr.bf16.mxu0 0
    %2007 = vmatpush1.bf16.msra.mxu0 0
    %2008 = vmatprep.subr.bf16.mxu0 0
    %2009 = vmatpush1.bf16.msra.mxu0 0
    %2010 = vmatprep.subr.bf16.mxu0 0
    %2011 = vmatpush1.bf16.msra.mxu0 0
    %2012 = vmatprep.subr.bf16.mxu0 0
    %2013 = vmatpush1.bf16.msra.mxu0 0
    %2014 = vmatprep.mubr.bf16.mxu0 0
    %2015 = vmatmul.mubr.bf16.gmra.mrb[0].mxu0 %v1920
    %v2016 = vpop.f32.mrb[0].mxu0
    %v2017 = vadd.f32 %v1932, %v2016
    %v2018 = vpop.f32.mrb[0].mxu0
    %v2019 = vpop.f32.mrb[0].mxu0
    %v2020 = vadd.f32 %v1932, %v2019
    %v2021 = vpop.f32.mrb[0].mxu0
    %2022 = vmatprep.mubr.bf16.mxu0 0
    %2023 = vmatmul.mubr.bf16.gmra.mrb[0].mxu0 %v1921
    %v2024 = vpop.f32.mrb[0].mxu0
    %v2025 = vadd.f32 %v1932, %v2024
    %v2026 = vpop.f32.mrb[0].mxu0
    %v2027 = vpop.f32.mrb[0].mxu0
    %v2028 = vadd.f32 %v1932, %v2027
    %v2029 = vpop.f32.mrb[0].mxu0
    %2030 = vmatprep.mubr.bf16.mxu0 0
    %2031 = vmatmul.mubr.bf16.gmra.mrb[0].mxu0 %v1922
    %v2032 = vpop.f32.mrb[0].mxu0
    %v2033 = vadd.f32 %v1932, %v2032
    %v2034 = vpop.f32.mrb[0].mxu0
    %v2035 = vpop.f32.mrb[0].mxu0
    %v2036 = vadd.f32 %v1932, %v2035
    %v2037 = vpop.f32.mrb[0].mxu0
    %2038 = vmatprep.mubr.bf16.mxu0 0
    %2039 = vmatmul.mubr.bf16.gmra.mrb[0].mxu0 %v1923
    %v2040 = vpop.f32.mrb[0].mxu0
    %v2041 = vadd.f32 %v1932, %v2040
    %v2042 = vpop.f32.mrb[0].mxu0
    %v2043 = vpop.f32.mrb[0].mxu0
    %v2044 = vadd.f32 %v1932, %v2043
    %v2045 = vpop.f32.mrb[0].mxu0
    %2046 = vmatprep.mubr.bf16.mxu0 0
    %2047 = vmatmul.mubr.bf16.gmra.mrb[0].mxu0 %v1924
    %v2048 = vpop.f32.mrb[0].mxu0
    %v2049 = vadd.f32 %v1932, %v2048
    %v2050 = vpop.f32.mrb[0].mxu0
    %v2051 = vpop.f32.mrb[0].mxu0
    %v2052 = vadd.f32 %v1932, %v2051
    %v2053 = vpop.f32.mrb[0].mxu0
    %2054 = vmatprep.mubr.bf16.mxu0 0
    %2055 = vmatmul.mubr.bf16.gmra.mrb[0].mxu0 %v1925
    %v2056 = vpop.f32.mrb[0].mxu0
    %v2057 = vadd.f32 %v1932, %v2056
    %v2058 = vpop.f32.mrb[0].mxu0
    %v2059 = vpop.f32.mrb[0].mxu0
    %v2060 = vadd.f32 %v1932, %v2059
    %v2061 = vpop.f32.mrb[0].mxu0
    %2062 = vmatprep.mubr.bf16.mxu0 0
    %2063 = vmatmul.mubr.bf16.gmra.mrb[0].mxu0 %v1926
    %v2064 = vpop.f32.mrb[0].mxu0
    %v2065 = vadd.f32 %v1932, %v2064
    %v2066 = vpop.f32.mrb[0].mxu0
    %v2067 = vpop.f32.mrb[0].mxu0
    %v2068 = vadd.f32 %v1932, %v2067
    %v2069 = vpop.f32.mrb[0].mxu0
    %2070 = vmatprep.mubr.bf16.mxu0 0
    %2071 = vmatmul.mubr.bf16.gmra.mrb[0].mxu0 %v1927
    %v2072 = vpop.f32.mrb[0].mxu0
    %v2073 = vadd.f32 %v1932, %v2072
    %v2074 = vpop.f32.mrb[0].mxu0
    %v2075 = vpop.f32.mrb[0].mxu0
    %v2076 = vadd.f32 %v1932, %v2075
    %v2077 = vpop.f32.mrb[0].mxu0
    %2078 = vdwg.mxu0
    %v2079 = vmax.f32 %v2017, 0.0
    %v2080 = vmax.f32 %v2020, 0.0
    %v2081 = vmax.f32 %v2025, 0.0
    %v2082 = vmax.f32 %v2028, 0.0
    %v2083 = vmax.f32 %v2033, 0.0
    %v2084 = vmax.f32 %v2036, 0.0
    %v2085 = vmax.f32 %v2041, 0.0
    %v2086 = vmax.f32 %v2044, 0.0
    %v2087 = vmax.f32 %v2049, 0.0
    %v2088 = vmax.f32 %v2052, 0.0
    %v2089 = vmax.f32 %v2057, 0.0
    %v2090 = vmax.f32 %v2060, 0.0
    %v2091 = vmax.f32 %v2065, 0.0
    %v2092 = vmax.f32 %v2068, 0.0
    %v2093 = vmax.f32 %v2073, 0.0
    %v2094 = vmax.f32 %v2076, 0.0
    %v2095 = vld [vmem:[#allocation2 + $0x780] sm:$0xf]
    %v2096 = vld [vmem:[#allocation2 + $0x78c] sm:$0xf]
    %v2097 = vld [vmem:[#allocation2 + $0x798] sm:$0xf]
    %v2098 = vld [vmem:[#allocation2 + $0x7a4] sm:$0xf]
    %v2099 = vld [vmem:[#allocation2 + $0x7b0] sm:$0xf]
    %v2100 = vld [vmem:[#allocation2 + $0x7bc] sm:$0xf]
    %v2101 = vld [vmem:[#allocation2 + $0x7c8] sm:$0xf]
    %v2102 = vld [vmem:[#allocation2 + $0x7d4] sm:$0xf]
    %v2103 = vld [vmem:[#allocation2 + $0x7e0] sm:$0xf]
    %v2104 = vld [vmem:[#allocation2 + $0x7ec] sm:$0xf]
    %v2105 = vld [vmem:[#allocation2 + $0x7f8] sm:$0xf]
    %v2106 = vld [vmem:[#allocation2 + $0x804] sm:$0xf]
    %v2107 = vld [vmem:[#allocation2 + $0x810] sm:$0xf]
    %v2108 = vld [vmem:[#allocation2 + $0x81c] sm:$0xf]
    %v2109 = vld [vmem:[#allocation2 + $0x828] sm:$0xf]
    %v2110 = vld [vmem:[#allocation2 + $0x834] sm:$0xf]
    %v2111 = vld [vmem:[#allocation4 + $0xa] sm:$0x1]
    %v2112 = vpack.c.bf16 %v2080, %v2079
    %v2113 = vpack.c.bf16 %v2082, %v2081
    %v2114 = vpack.c.bf16 %v2084, %v2083
    %v2115 = vpack.c.bf16 %v2086, %v2085
    %v2116 = vpack.c.bf16 %v2088, %v2087
    %v2117 = vpack.c.bf16 %v2090, %v2089
    %v2118 = vpack.c.bf16 %v2092, %v2091
    %v2119 = vpack.c.bf16 %v2094, %v2093
    %v2121 = vlaneseq
    %v2122 = vshrl.u32 %v2121, 7
    %v2123 = vsub.s32 0, %v2122
    %v2124 = vrot.slane %v2111, %v2123
    %v2142 = vunpack.c.l.b16 %v2095
    %v2143 = vunpack.c.l.b16 %v2096
    %v2144 = vunpack.c.l.b16 %v2097
    %v2145 = vunpack.c.l.b16 %v2098
    %v2146 = vunpack.c.l.b16 %v2099
    %v2147 = vunpack.c.l.b16 %v2100
    %v2148 = vunpack.c.l.b16 %v2101
    %v2149 = vunpack.c.l.b16 %v2102
    %v2150 = vunpack.c.l.b16 %v2103
    %v2151 = vunpack.c.l.b16 %v2104
    %v2152 = vunpack.c.l.b16 %v2105
    %v2153 = vunpack.c.l.b16 %v2106
    %v2154 = vunpack.c.l.b16 %v2107
    %v2155 = vunpack.c.l.b16 %v2108
    %v2156 = vunpack.c.l.b16 %v2109
    %v2157 = vunpack.c.l.b16 %v2110
    %v2158 = vpack.c.b16 %v2143, %v2142
    %v2159 = vpack.c.b16 %v2145, %v2144
    %v2160 = vpack.c.b16 %v2147, %v2146
    %v2161 = vpack.c.b16 %v2149, %v2148
    %v2162 = vpack.c.b16 %v2151, %v2150
    %v2163 = vpack.c.b16 %v2153, %v2152
    %v2164 = vpack.c.b16 %v2155, %v2154
    %v2165 = vpack.c.b16 %v2157, %v2156
    %2174 = vmatprep.subr.bf16.mxu0 0
    %2175 = vmatpush1.bf16.msra.mxu0 %v2158
    %2176 = vmatprep.subr.bf16.mxu0 0
    %2177 = vmatpush1.bf16.msra.mxu0 %v2159
    %2178 = vmatprep.subr.bf16.mxu0 0
    %2179 = vmatpush1.bf16.msra.mxu0 %v2160
    %2180 = vmatprep.subr.bf16.mxu0 0
    %2181 = vmatpush1.bf16.msra.mxu0 %v2161
    %2182 = vmatprep.subr.bf16.mxu0 0
    %2183 = vmatpush1.bf16.msra.mxu0 %v2162
    %2184 = vmatprep.subr.bf16.mxu0 0
    %2185 = vmatpush1.bf16.msra.mxu0 %v2163
    %2186 = vmatprep.subr.bf16.mxu0 0
    %2187 = vmatpush1.bf16.msra.mxu0 %v2164
    %2188 = vmatprep.subr.bf16.mxu0 0
    %2189 = vmatpush1.bf16.msra.mxu0 %v2165
    %2190 = vmatprep.subr.bf16.mxu0 0
    %2191 = vmatpush1.bf16.msra.mxu0 0
    %2192 = vmatprep.subr.bf16.mxu0 0
    %2193 = vmatpush1.bf16.msra.mxu0 0
    %2194 = vmatprep.subr.bf16.mxu0 0
    %2195 = vmatpush1.bf16.msra.mxu0 0
    %2196 = vmatprep.subr.bf16.mxu0 0
    %2197 = vmatpush1.bf16.msra.mxu0 0
    %2198 = vmatprep.subr.bf16.mxu0 0
    %2199 = vmatpush1.bf16.msra.mxu0 0
    %2200 = vmatprep.subr.bf16.mxu0 0
    %2201 = vmatpush1.bf16.msra.mxu0 0
    %2202 = vmatprep.subr.bf16.mxu0 0
    %2203 = vmatpush1.bf16.msra.mxu0 0
    %2204 = vmatprep.subr.bf16.mxu0 0
    %2205 = vmatpush1.bf16.msra.mxu0 0
    %2206 = vmatprep.mubr.bf16.mxu0 0
    %2207 = vmatmul.mubr.bf16.gmra.mrb[0].mxu0 %v2112
    %v2208 = vpop.f32.mrb[0].mxu0
    %v2209 = vadd.f32 %v2124, %v2208
    %v2210 = vpop.f32.mrb[0].mxu0
    %v2211 = vpop.f32.mrb[0].mxu0
    %v2212 = vadd.f32 %v2124, %v2211
    %v2213 = vpop.f32.mrb[0].mxu0
    %2214 = vmatprep.mubr.bf16.mxu0 0
    %2215 = vmatmul.mubr.bf16.gmra.mrb[0].mxu0 %v2113
    %v2216 = vpop.f32.mrb[0].mxu0
    %v2217 = vadd.f32 %v2124, %v2216
    %v2218 = vpop.f32.mrb[0].mxu0
    %v2219 = vpop.f32.mrb[0].mxu0
    %v2220 = vadd.f32 %v2124, %v2219
    %v2221 = vpop.f32.mrb[0].mxu0
    %2222 = vmatprep.mubr.bf16.mxu0 0
    %2223 = vmatmul.mubr.bf16.gmra.mrb[0].mxu0 %v2114
    %v2224 = vpop.f32.mrb[0].mxu0
    %v2225 = vadd.f32 %v2124, %v2224
    %v2226 = vpop.f32.mrb[0].mxu0
    %v2227 = vpop.f32.mrb[0].mxu0
    %v2228 = vadd.f32 %v2124, %v2227
    %v2229 = vpop.f32.mrb[0].mxu0
    %2230 = vmatprep.mubr.bf16.mxu0 0
    %2231 = vmatmul.mubr.bf16.gmra.mrb[0].mxu0 %v2115
    %v2232 = vpop.f32.mrb[0].mxu0
    %v2233 = vadd.f32 %v2124, %v2232
    %v2234 = vpop.f32.mrb[0].mxu0
    %v2235 = vpop.f32.mrb[0].mxu0
    %v2236 = vadd.f32 %v2124, %v2235
    %v2237 = vpop.f32.mrb[0].mxu0
    %2238 = vmatprep.mubr.bf16.mxu0 0
    %2239 = vmatmul.mubr.bf16.gmra.mrb[0].mxu0 %v2116
    %v2240 = vpop.f32.mrb[0].mxu0
    %v2241 = vadd.f32 %v2124, %v2240
    %v2242 = vpop.f32.mrb[0].mxu0
    %v2243 = vpop.f32.mrb[0].mxu0
    %v2244 = vadd.f32 %v2124, %v2243
    %v2245 = vpop.f32.mrb[0].mxu0
    %2246 = vmatprep.mubr.bf16.mxu0 0
    %2247 = vmatmul.mubr.bf16.gmra.mrb[0].mxu0 %v2117
    %v2248 = vpop.f32.mrb[0].mxu0
    %v2249 = vadd.f32 %v2124, %v2248
    %v2250 = vpop.f32.mrb[0].mxu0
    %v2251 = vpop.f32.mrb[0].mxu0
    %v2252 = vadd.f32 %v2124, %v2251
    %v2253 = vpop.f32.mrb[0].mxu0
    %2254 = vmatprep.mubr.bf16.mxu0 0
    %2255 = vmatmul.mubr.bf16.gmra.mrb[0].mxu0 %v2118
    %v2256 = vpop.f32.mrb[0].mxu0
    %v2257 = vadd.f32 %v2124, %v2256
    %v2258 = vpop.f32.mrb[0].mxu0
    %v2259 = vpop.f32.mrb[0].mxu0
    %v2260 = vadd.f32 %v2124, %v2259
    %v2261 = vpop.f32.mrb[0].mxu0
    %2262 = vmatprep.mubr.bf16.mxu0 0
    %2263 = vmatmul.mubr.bf16.gmra.mrb[0].mxu0 %v2119
    %v2264 = vpop.f32.mrb[0].mxu0
    %v2265 = vadd.f32 %v2124, %v2264
    %v2266 = vpop.f32.mrb[0].mxu0
    %v2267 = vpop.f32.mrb[0].mxu0
    %v2268 = vadd.f32 %v2124, %v2267
    %v2269 = vpop.f32.mrb[0].mxu0
    %2270 = vdwg.mxu0
    %v2271 = vmax.f32 %v2209, 0.0
    %v2272 = vmax.f32 %v2212, 0.0
    %v2273 = vmax.f32 %v2217, 0.0
    %v2274 = vmax.f32 %v2220, 0.0
    %v2275 = vmax.f32 %v2225, 0.0
    %v2276 = vmax.f32 %v2228, 0.0
    %v2277 = vmax.f32 %v2233, 0.0
    %v2278 = vmax.f32 %v2236, 0.0
    %v2279 = vmax.f32 %v2241, 0.0
    %v2280 = vmax.f32 %v2244, 0.0
    %v2281 = vmax.f32 %v2249, 0.0
    %v2282 = vmax.f32 %v2252, 0.0
    %v2283 = vmax.f32 %v2257, 0.0
    %v2284 = vmax.f32 %v2260, 0.0
    %v2285 = vmax.f32 %v2265, 0.0
    %v2286 = vmax.f32 %v2268, 0.0
    %v2287 = vld [vmem:[#allocation2 + $0x840] sm:$0xf]
    %v2288 = vld [vmem:[#allocation2 + $0x84c] sm:$0xf]
    %v2289 = vld [vmem:[#allocation2 + $0x858] sm:$0xf]
    %v2290 = vld [vmem:[#allocation2 + $0x864] sm:$0xf]
    %v2291 = vld [vmem:[#allocation2 + $0x870] sm:$0xf]
    %v2292 = vld [vmem:[#allocation2 + $0x87c] sm:$0xf]
    %v2293 = vld [vmem:[#allocation2 + $0x888] sm:$0xf]
    %v2294 = vld [vmem:[#allocation2 + $0x894] sm:$0xf]
    %v2295 = vld [vmem:[#allocation2 + $0x8a0] sm:$0xf]
    %v2296 = vld [vmem:[#allocation2 + $0x8ac] sm:$0xf]
    %v2297 = vld [vmem:[#allocation2 + $0x8b8] sm:$0xf]
    %v2298 = vld [vmem:[#allocation2 + $0x8c4] sm:$0xf]
    %v2299 = vld [vmem:[#allocation2 + $0x8d0] sm:$0xf]
    %v2300 = vld [vmem:[#allocation2 + $0x8dc] sm:$0xf]
    %v2301 = vld [vmem:[#allocation2 + $0x8e8] sm:$0xf]
    %v2302 = vld [vmem:[#allocation2 + $0x8f4] sm:$0xf]
    %v2303 = vld [vmem:[#allocation4 + $0xb] sm:$0x1]
    %v2304 = vpack.c.bf16 %v2272, %v2271
    %v2305 = vpack.c.bf16 %v2274, %v2273
    %v2306 = vpack.c.bf16 %v2276, %v2275
    %v2307 = vpack.c.bf16 %v2278, %v2277
    %v2308 = vpack.c.bf16 %v2280, %v2279
    %v2309 = vpack.c.bf16 %v2282, %v2281
    %v2310 = vpack.c.bf16 %v2284, %v2283
    %v2311 = vpack.c.bf16 %v2286, %v2285
    %v2313 = vlaneseq
    %v2314 = vshrl.u32 %v2313, 7
    %v2315 = vsub.s32 0, %v2314
    %v2316 = vrot.slane %v2303, %v2315
    %v2334 = vunpack.c.l.b16 %v2287
    %v2335 = vunpack.c.l.b16 %v2288
    %v2336 = vunpack.c.l.b16 %v2289
    %v2337 = vunpack.c.l.b16 %v2290
    %v2338 = vunpack.c.l.b16 %v2291
    %v2339 = vunpack.c.l.b16 %v2292
    %v2340 = vunpack.c.l.b16 %v2293
    %v2341 = vunpack.c.l.b16 %v2294
    %v2342 = vunpack.c.l.b16 %v2295
    %v2343 = vunpack.c.l.b16 %v2296
    %v2344 = vunpack.c.l.b16 %v2297
    %v2345 = vunpack.c.l.b16 %v2298
    %v2346 = vunpack.c.l.b16 %v2299
    %v2347 = vunpack.c.l.b16 %v2300
    %v2348 = vunpack.c.l.b16 %v2301
    %v2349 = vunpack.c.l.b16 %v2302
    %v2350 = vpack.c.b16 %v2335, %v2334
    %v2351 = vpack.c.b16 %v2337, %v2336
    %v2352 = vpack.c.b16 %v2339, %v2338
    %v2353 = vpack.c.b16 %v2341, %v2340
    %v2354 = vpack.c.b16 %v2343, %v2342
    %v2355 = vpack.c.b16 %v2345, %v2344
    %v2356 = vpack.c.b16 %v2347, %v2346
    %v2357 = vpack.c.b16 %v2349, %v2348
    %2366 = vmatprep.subr.bf16.mxu0 0
    %2367 = vmatpush1.bf16.msra.mxu0 %v2350
    %2368 = vmatprep.subr.bf16.mxu0 0
    %2369 = vmatpush1.bf16.msra.mxu0 %v2351
    %2370 = vmatprep.subr.bf16.mxu0 0
    %2371 = vmatpush1.bf16.msra.mxu0 %v2352
    %2372 = vmatprep.subr.bf16.mxu0 0
    %2373 = vmatpush1.bf16.msra.mxu0 %v2353
    %2374 = vmatprep.subr.bf16.mxu0 0
    %2375 = vmatpush1.bf16.msra.mxu0 %v2354
    %2376 = vmatprep.subr.bf16.mxu0 0
    %2377 = vmatpush1.bf16.msra.mxu0 %v2355
    %2378 = vmatprep.subr.bf16.mxu0 0
    %2379 = vmatpush1.bf16.msra.mxu0 %v2356
    %2380 = vmatprep.subr.bf16.mxu0 0
    %2381 = vmatpush1.bf16.msra.mxu0 %v2357
    %2382 = vmatprep.subr.bf16.mxu0 0
    %2383 = vmatpush1.bf16.msra.mxu0 0
    %2384 = vmatprep.subr.bf16.mxu0 0
    %2385 = vmatpush1.bf16.msra.mxu0 0
    %2386 = vmatprep.subr.bf16.mxu0 0
    %2387 = vmatpush1.bf16.msra.mxu0 0
    %2388 = vmatprep.subr.bf16.mxu0 0
    %2389 = vmatpush1.bf16.msra.mxu0 0
    %2390 = vmatprep.subr.bf16.mxu0 0
    %2391 = vmatpush1.bf16.msra.mxu0 0
    %2392 = vmatprep.subr.bf16.mxu0 0
    %2393 = vmatpush1.bf16.msra.mxu0 0
    %2394 = vmatprep.subr.bf16.mxu0 0
    %2395 = vmatpush1.bf16.msra.mxu0 0
    %2396 = vmatprep.subr.bf16.mxu0 0
    %2397 = vmatpush1.bf16.msra.mxu0 0
    %2398 = vmatprep.mubr.bf16.mxu0 0
    %2399 = vmatmul.mubr.bf16.gmra.mrb[0].mxu0 %v2304
    %v2400 = vpop.f32.mrb[0].mxu0
    %v2401 = vadd.f32 %v2316, %v2400
    %v2402 = vpop.f32.mrb[0].mxu0
    %v2403 = vpop.f32.mrb[0].mxu0
    %v2404 = vadd.f32 %v2316, %v2403
    %v2405 = vpop.f32.mrb[0].mxu0
    %2406 = vmatprep.mubr.bf16.mxu0 0
    %2407 = vmatmul.mubr.bf16.gmra.mrb[0].mxu0 %v2305
    %v2408 = vpop.f32.mrb[0].mxu0
    %v2409 = vadd.f32 %v2316, %v2408
    %v2410 = vpop.f32.mrb[0].mxu0
    %v2411 = vpop.f32.mrb[0].mxu0
    %v2412 = vadd.f32 %v2316, %v2411
    %v2413 = vpop.f32.mrb[0].mxu0
    %2414 = vmatprep.mubr.bf16.mxu0 0
    %2415 = vmatmul.mubr.bf16.gmra.mrb[0].mxu0 %v2306
    %v2416 = vpop.f32.mrb[0].mxu0
    %v2417 = vadd.f32 %v2316, %v2416
    %v2418 = vpop.f32.mrb[0].mxu0
    %v2419 = vpop.f32.mrb[0].mxu0
    %v2420 = vadd.f32 %v2316, %v2419
    %v2421 = vpop.f32.mrb[0].mxu0
    %2422 = vmatprep.mubr.bf16.mxu0 0
    %2423 = vmatmul.mubr.bf16.gmra.mrb[0].mxu0 %v2307
    %v2424 = vpop.f32.mrb[0].mxu0
    %v2425 = vadd.f32 %v2316, %v2424
    %v2426 = vpop.f32.mrb[0].mxu0
    %v2427 = vpop.f32.mrb[0].mxu0
    %v2428 = vadd.f32 %v2316, %v2427
    %v2429 = vpop.f32.mrb[0].mxu0
    %2430 = vmatprep.mubr.bf16.mxu0 0
    %2431 = vmatmul.mubr.bf16.gmra.mrb[0].mxu0 %v2308
    %v2432 = vpop.f32.mrb[0].mxu0
    %v2433 = vadd.f32 %v2316, %v2432
    %v2434 = vpop.f32.mrb[0].mxu0
    %v2435 = vpop.f32.mrb[0].mxu0
    %v2436 = vadd.f32 %v2316, %v2435
    %v2437 = vpop.f32.mrb[0].mxu0
    %2438 = vmatprep.mubr.bf16.mxu0 0
    %2439 = vmatmul.mubr.bf16.gmra.mrb[0].mxu0 %v2309
    %v2440 = vpop.f32.mrb[0].mxu0
    %v2441 = vadd.f32 %v2316, %v2440
    %v2442 = vpop.f32.mrb[0].mxu0
    %v2443 = vpop.f32.mrb[0].mxu0
    %v2444 = vadd.f32 %v2316, %v2443
    %v2445 = vpop.f32.mrb[0].mxu0
    %2446 = vmatprep.mubr.bf16.mxu0 0
    %2447 = vmatmul.mubr.bf16.gmra.mrb[0].mxu0 %v2310
    %v2448 = vpop.f32.mrb[0].mxu0
    %v2449 = vadd.f32 %v2316, %v2448
    %v2450 = vpop.f32.mrb[0].mxu0
    %v2451 = vpop.f32.mrb[0].mxu0
    %v2452 = vadd.f32 %v2316, %v2451
    %v2453 = vpop.f32.mrb[0].mxu0
    %2454 = vmatprep.mubr.bf16.mxu0 0
    %2455 = vmatmul.mubr.bf16.gmra.mrb[0].mxu0 %v2311
    %v2456 = vpop.f32.mrb[0].mxu0
    %v2457 = vadd.f32 %v2316, %v2456
    %v2458 = vpop.f32.mrb[0].mxu0
    %v2459 = vpop.f32.mrb[0].mxu0
    %v2460 = vadd.f32 %v2316, %v2459
    %v2461 = vpop.f32.mrb[0].mxu0
    %2462 = vdwg.mxu0
    %v2463 = vmax.f32 %v2401, 0.0
    %v2464 = vmax.f32 %v2404, 0.0
    %v2465 = vmax.f32 %v2409, 0.0
    %v2466 = vmax.f32 %v2412, 0.0
    %v2467 = vmax.f32 %v2417, 0.0
    %v2468 = vmax.f32 %v2420, 0.0
    %v2469 = vmax.f32 %v2425, 0.0
    %v2470 = vmax.f32 %v2428, 0.0
    %v2471 = vmax.f32 %v2433, 0.0
    %v2472 = vmax.f32 %v2436, 0.0
    %v2473 = vmax.f32 %v2441, 0.0
    %v2474 = vmax.f32 %v2444, 0.0
    %v2475 = vmax.f32 %v2449, 0.0
    %v2476 = vmax.f32 %v2452, 0.0
    %v2477 = vmax.f32 %v2457, 0.0
    %v2478 = vmax.f32 %v2460, 0.0
    %v2479 = vld [vmem:[#allocation2 + $0x900] sm:$0xf]
    %v2480 = vld [vmem:[#allocation2 + $0x90c] sm:$0xf]
    %v2481 = vld [vmem:[#allocation2 + $0x918] sm:$0xf]
    %v2482 = vld [vmem:[#allocation2 + $0x924] sm:$0xf]
    %v2483 = vld [vmem:[#allocation2 + $0x930] sm:$0xf]
    %v2484 = vld [vmem:[#allocation2 + $0x93c] sm:$0xf]
    %v2485 = vld [vmem:[#allocation2 + $0x948] sm:$0xf]
    %v2486 = vld [vmem:[#allocation2 + $0x954] sm:$0xf]
    %v2487 = vld [vmem:[#allocation2 + $0x960] sm:$0xf]
    %v2488 = vld [vmem:[#allocation2 + $0x96c] sm:$0xf]
    %v2489 = vld [vmem:[#allocation2 + $0x978] sm:$0xf]
    %v2490 = vld [vmem:[#allocation2 + $0x984] sm:$0xf]
    %v2491 = vld [vmem:[#allocation2 + $0x990] sm:$0xf]
    %v2492 = vld [vmem:[#allocation2 + $0x99c] sm:$0xf]
    %v2493 = vld [vmem:[#allocation2 + $0x9a8] sm:$0xf]
    %v2494 = vld [vmem:[#allocation2 + $0x9b4] sm:$0xf]
    %v2495 = vld [vmem:[#allocation4 + $0xc] sm:$0x1]
    %v2496 = vpack.c.bf16 %v2464, %v2463
    %v2497 = vpack.c.bf16 %v2466, %v2465
    %v2498 = vpack.c.bf16 %v2468, %v2467
    %v2499 = vpack.c.bf16 %v2470, %v2469
    %v2500 = vpack.c.bf16 %v2472, %v2471
    %v2501 = vpack.c.bf16 %v2474, %v2473
    %v2502 = vpack.c.bf16 %v2476, %v2475
    %v2503 = vpack.c.bf16 %v2478, %v2477
    %v2505 = vlaneseq
    %v2506 = vshrl.u32 %v2505, 7
    %v2507 = vsub.s32 0, %v2506
    %v2508 = vrot.slane %v2495, %v2507
    %v2526 = vunpack.c.l.b16 %v2479
    %v2527 = vunpack.c.l.b16 %v2480
    %v2528 = vunpack.c.l.b16 %v2481
    %v2529 = vunpack.c.l.b16 %v2482
    %v2530 = vunpack.c.l.b16 %v2483
    %v2531 = vunpack.c.l.b16 %v2484
    %v2532 = vunpack.c.l.b16 %v2485
    %v2533 = vunpack.c.l.b16 %v2486
    %v2534 = vunpack.c.l.b16 %v2487
    %v2535 = vunpack.c.l.b16 %v2488
    %v2536 = vunpack.c.l.b16 %v2489
    %v2537 = vunpack.c.l.b16 %v2490
    %v2538 = vunpack.c.l.b16 %v2491
    %v2539 = vunpack.c.l.b16 %v2492
    %v2540 = vunpack.c.l.b16 %v2493
    %v2541 = vunpack.c.l.b16 %v2494
    %v2542 = vpack.c.b16 %v2527, %v2526
    %v2543 = vpack.c.b16 %v2529, %v2528
    %v2544 = vpack.c.b16 %v2531, %v2530
    %v2545 = vpack.c.b16 %v2533, %v2532
    %v2546 = vpack.c.b16 %v2535, %v2534
    %v2547 = vpack.c.b16 %v2537, %v2536
    %v2548 = vpack.c.b16 %v2539, %v2538
    %v2549 = vpack.c.b16 %v2541, %v2540
    %2558 = vmatprep.subr.bf16.mxu0 0
    %2559 = vmatpush1.bf16.msra.mxu0 %v2542
    %2560 = vmatprep.subr.bf16.mxu0 0
    %2561 = vmatpush1.bf16.msra.mxu0 %v2543
    %2562 = vmatprep.subr.bf16.mxu0 0
    %2563 = vmatpush1.bf16.msra.mxu0 %v2544
    %2564 = vmatprep.subr.bf16.mxu0 0
    %2565 = vmatpush1.bf16.msra.mxu0 %v2545
    %2566 = vmatprep.subr.bf16.mxu0 0
    %2567 = vmatpush1.bf16.msra.mxu0 %v2546
    %2568 = vmatprep.subr.bf16.mxu0 0
    %2569 = vmatpush1.bf16.msra.mxu0 %v2547
    %2570 = vmatprep.subr.bf16.mxu0 0
    %2571 = vmatpush1.bf16.msra.mxu0 %v2548
    %2572 = vmatprep.subr.bf16.mxu0 0
    %2573 = vmatpush1.bf16.msra.mxu0 %v2549
    %2574 = vmatprep.subr.bf16.mxu0 0
    %2575 = vmatpush1.bf16.msra.mxu0 0
    %2576 = vmatprep.subr.bf16.mxu0 0
    %2577 = vmatpush1.bf16.msra.mxu0 0
    %2578 = vmatprep.subr.bf16.mxu0 0
    %2579 = vmatpush1.bf16.msra.mxu0 0
    %2580 = vmatprep.subr.bf16.mxu0 0
    %2581 = vmatpush1.bf16.msra.mxu0 0
    %2582 = vmatprep.subr.bf16.mxu0 0
    %2583 = vmatpush1.bf16.msra.mxu0 0
    %2584 = vmatprep.subr.bf16.mxu0 0
    %2585 = vmatpush1.bf16.msra.mxu0 0
    %2586 = vmatprep.subr.bf16.mxu0 0
    %2587 = vmatpush1.bf16.msra.mxu0 0
    %2588 = vmatprep.subr.bf16.mxu0 0
    %2589 = vmatpush1.bf16.msra.mxu0 0
    %2590 = vmatprep.mubr.bf16.mxu0 0
    %2591 = vmatmul.mubr.bf16.gmra.mrb[0].mxu0 %v2496
    %v2592 = vpop.f32.mrb[0].mxu0
    %v2593 = vadd.f32 %v2508, %v2592
    %v2594 = vpop.f32.mrb[0].mxu0
    %v2595 = vpop.f32.mrb[0].mxu0
    %v2596 = vadd.f32 %v2508, %v2595
    %v2597 = vpop.f32.mrb[0].mxu0
    %2598 = vmatprep.mubr.bf16.mxu0 0
    %2599 = vmatmul.mubr.bf16.gmra.mrb[0].mxu0 %v2497
    %v2600 = vpop.f32.mrb[0].mxu0
    %v2601 = vadd.f32 %v2508, %v2600
    %v2602 = vpop.f32.mrb[0].mxu0
    %v2603 = vpop.f32.mrb[0].mxu0
    %v2604 = vadd.f32 %v2508, %v2603
    %v2605 = vpop.f32.mrb[0].mxu0
    %2606 = vmatprep.mubr.bf16.mxu0 0
    %2607 = vmatmul.mubr.bf16.gmra.mrb[0].mxu0 %v2498
    %v2608 = vpop.f32.mrb[0].mxu0
    %v2609 = vadd.f32 %v2508, %v2608
    %v2610 = vpop.f32.mrb[0].mxu0
    %v2611 = vpop.f32.mrb[0].mxu0
    %v2612 = vadd.f32 %v2508, %v2611
    %v2613 = vpop.f32.mrb[0].mxu0
    %2614 = vmatprep.mubr.bf16.mxu0 0
    %2615 = vmatmul.mubr.bf16.gmra.mrb[0].mxu0 %v2499
    %v2616 = vpop.f32.mrb[0].mxu0
    %v2617 = vadd.f32 %v2508, %v2616
    %v2618 = vpop.f32.mrb[0].mxu0
    %v2619 = vpop.f32.mrb[0].mxu0
    %v2620 = vadd.f32 %v2508, %v2619
    %v2621 = vpop.f32.mrb[0].mxu0
    %2622 = vmatprep.mubr.bf16.mxu0 0
    %2623 = vmatmul.mubr.bf16.gmra.mrb[0].mxu0 %v2500
    %v2624 = vpop.f32.mrb[0].mxu0
    %v2625 = vadd.f32 %v2508, %v2624
    %v2626 = vpop.f32.mrb[0].mxu0
    %v2627 = vpop.f32.mrb[0].mxu0
    %v2628 = vadd.f32 %v2508, %v2627
    %v2629 = vpop.f32.mrb[0].mxu0
    %2630 = vmatprep.mubr.bf16.mxu0 0
    %2631 = vmatmul.mubr.bf16.gmra.mrb[0].mxu0 %v2501
    %v2632 = vpop.f32.mrb[0].mxu0
    %v2633 = vadd.f32 %v2508, %v2632
    %v2634 = vpop.f32.mrb[0].mxu0
    %v2635 = vpop.f32.mrb[0].mxu0
    %v2636 = vadd.f32 %v2508, %v2635
    %v2637 = vpop.f32.mrb[0].mxu0
    %2638 = vmatprep.mubr.bf16.mxu0 0
    %2639 = vmatmul.mubr.bf16.gmra.mrb[0].mxu0 %v2502
    %v2640 = vpop.f32.mrb[0].mxu0
    %v2641 = vadd.f32 %v2508, %v2640
    %v2642 = vpop.f32.mrb[0].mxu0
    %v2643 = vpop.f32.mrb[0].mxu0
    %v2644 = vadd.f32 %v2508, %v2643
    %v2645 = vpop.f32.mrb[0].mxu0
    %2646 = vmatprep.mubr.bf16.mxu0 0
    %2647 = vmatmul.mubr.bf16.gmra.mrb[0].mxu0 %v2503
    %v2648 = vpop.f32.mrb[0].mxu0
    %v2649 = vadd.f32 %v2508, %v2648
    %v2650 = vpop.f32.mrb[0].mxu0
    %v2651 = vpop.f32.mrb[0].mxu0
    %v2652 = vadd.f32 %v2508, %v2651
    %v2653 = vpop.f32.mrb[0].mxu0
    %2654 = vdwg.mxu0
    %2655 = vst [vmem:[%s3] sm:$0xff] %v2593
    %2656 = vst [vmem:[%s3 + $0x8] sm:$0xff] %v2596
    %2657 = vst [vmem:[%s3 + $0x10] sm:$0xff] %v2601
    %2658 = vst [vmem:[%s3 + $0x18] sm:$0xff] %v2604
    %2659 = vst [vmem:[%s3 + $0x20] sm:$0xff] %v2609
    %2660 = vst [vmem:[%s3 + $0x28] sm:$0xff] %v2612
    %2661 = vst [vmem:[%s3 + $0x30] sm:$0xff] %v2617
    %2662 = vst [vmem:[%s3 + $0x38] sm:$0xff] %v2620
    %2663 = vst [vmem:[%s3 + $0x40] sm:$0xff] %v2625
    %2664 = vst [vmem:[%s3 + $0x48] sm:$0xff] %v2628
    %2665 = vst [vmem:[%s3 + $0x50] sm:$0xff] %v2633
    %2666 = vst [vmem:[%s3 + $0x58] sm:$0xff] %v2636
    %2667 = vst [vmem:[%s3 + $0x60] sm:$0xff] %v2641
    %2668 = vst [vmem:[%s3 + $0x68] sm:$0xff] %v2644
    %2669 = vst [vmem:[%s3 + $0x70] sm:$0xff] %v2649
    %2670 = vst [vmem:[%s3 + $0x78] sm:$0xff] %v2652
    // Predicated region
    $region22: #{classifier_net_forward.1} parent=1 // pred_check
      _
    $region23: #{classifier_net_forward.1} parent=1 // pred_check_branch
      %2672 = sbr.rel (0) target = $region25
    $region24: #{classifier_net_forward.1} parent=1 // pred_region
      _
    $region25: #{classifier_net_forward.1} parent=1 // pred_fallthru
      _
    // Predicated region
    $region26: #{classifier_net_forward.1} parent=1 // pred_check
      _
    $region27: #{classifier_net_forward.1} parent=1 // pred_check_branch
      %2674 = sbr.rel (0) target = $region29
    $region28: #{classifier_net_forward.1} parent=1 // pred_region
      _
    $region29: #{classifier_net_forward.1} parent=1 // pred_fallthru
      _
    %2675 = vsyncpa [#allocation3], 1
    %2676 = vsyncpa [#allocation5], 1

</llo_original>
